<compile_context>
chip_gen: v6e
topology: v6e:2x2x1
jax: 0.10.0
libtpu: 0.0.40
codegen_flags: <defaults>
</compile_context>

<pallas_src>
import functools

import jax
import jax.numpy as jnp
from jax import lax
from jax.experimental import pallas as pl
from jax.experimental.pallas import tpu as pltpu


def _round_up(a, b):
    return ((a + b - 1) // b) * b


def _padded_bytes(rows, cols, itemsize=4):
    """VMEM footprint of a (rows, cols) f32 buffer after (8, 128) tiling."""
    return _round_up(max(rows, 1), 8) * _round_up(max(cols, 1), 128) * itemsize


def _vmem_estimate(tm, n_k, n_c):
    """Rough VMEM footprint of the fused kernel (double-buffered tiles)."""
    per_step = (_padded_bytes(tm, n_c)      # x tile
                + _padded_bytes(tm, 1)      # mass tile
                + _padded_bytes(tm, n_k)    # evecs tile
                + _padded_bytes(tm, n_c))   # output tile
    resident = 3 * _padded_bytes(n_k, n_c)  # coefs (2 buffers) + f32 acc scratch
    return 2 * per_step + resident


# ---------------------------------------------------------------------------
# Fused kernel.  grid = (phase, node_tile):
#   phase 0: acc[K,C] += evecs_tile^T @ (mass_tile * x_tile); on the last node
#            tile fold the diffusion coefficients (spectrum stays f32).
#   phase 1: out_tile = evecs_tile @ acc   (acc cast to bf16 right at the dot)
# ---------------------------------------------------------------------------
def _fused_diffusion_kernel(x_ref, mass_ref, evecs_ref, coefs_ref, out_ref,
                            acc_ref, *, n_nodes, tm, compute_dtype, mask_tail):
    ph = pl.program_id(0)       # 0 = analysis (to_basis), 1 = synthesis (from_basis)
    i = pl.program_id(1)        # node-tile index
    n_tiles = pl.num_programs(1)

    if mask_tail:
        row = i * tm + lax.broadcasted_iota(jnp.int32, (tm, 1), 0)
        valid = row < n_nodes
    else:
        valid = None

    @pl.when(ph == 0)
    def _analysis():
        @pl.when(i == 0)
        def _init():
            acc_ref[...] = jnp.zeros_like(acc_ref)

        ev = evecs_ref[...]
        xw = x_ref[...] * mass_ref[...]
        if mask_tail:
            ev = jnp.where(valid, ev, 0.0)
            xw = jnp.where(valid, xw, 0.0)
        # Contract over the node (sublane) axis: [tm,K]^T @ [tm,C] -> [K,C], f32 acc.
        acc_ref[...] += lax.dot_general(
            ev.astype(compute_dtype), xw.astype(compute_dtype),
            (((0,), (0,)), ((), ())),
            preferred_element_type=jnp.float32)

        @pl.when(i == n_tiles - 1)
        def _finalize():
            # Fold the grid-invariant diffusion coefficients; keep spectrum f32.
            acc_ref[...] = coefs_ref[...] * acc_ref[...]

    @pl.when(ph == 1)
    def _synthesis():
        ev = evecs_ref[...]
        if mask_tail:
            ev = jnp.where(valid, ev, 0.0)
        out_ref[...] = jnp.dot(
            ev.astype(compute_dtype), acc_ref[...].astype(compute_dtype),
            preferred_element_type=jnp.float32).astype(out_ref.dtype)


# ---------------------------------------------------------------------------
# Kron-product diffusion coefficients (tiny [K, C]; grid-invariant, so it is
# computed once in the wrapper).
# ---------------------------------------------------------------------------
def diffusion_coefs_product(diffusion_time, evals_list, n_channels, single_t):
    P = len(evals_list)
    if single_t:
        fac = jnp.exp(-diffusion_time[0] * evals_list[0])
        for p in range(1, P):
            fac = jnp.kron(fac, jnp.exp(-diffusion_time[p] * evals_list[p]))
        return jnp.broadcast_to(fac[:, None],
                                (fac.shape[0], n_channels)).astype(jnp.float32)
    coefs = jnp.exp(-evals_list[0][:, None] * diffusion_time[0][None, :])
    for p in range(1, P):
        e_p = jnp.exp(-evals_list[p][:, None] * diffusion_time[p][None, :])
        coefs = (coefs[:, None, :] * e_p[None, :, :]).reshape(-1, n_channels)
    return coefs.astype(jnp.float32)


# ---------------------------------------------------------------------------
# Forward wrapper (mirrors Time_derivative_diffusion_product.forward)
# ---------------------------------------------------------------------------
def time_derivative_diffusion_product_forward(
        diffusion_time, x, edge_index, L, mass, evals_list, evecs, *,
        single_t=False, method="spectral", node_tile=512, use_bf16=True):
    del edge_index, L  # unused in the spectral path, exactly as in the reference
    if method != "spectral":
        raise NotImplementedError("only method='spectral' is implemented")

    N, C = x.shape
    K = evecs.shape[1]
    if (not single_t) and diffusion_time.shape[-1] != C:
        raise ValueError(
            f"x has wrong shape = {x.shape}; last dim should equal the number of "
            f"channels = {diffusion_time.shape[-1]} implied by diffusion_time")

    coefs = diffusion_coefs_product(diffusion_time, evals_list, C, single_t)
    if coefs.shape[0] != K:
        raise ValueError("prod(len(evals[p])) must equal evecs.shape[1]")

    compute_dtype = jnp.bfloat16 if use_bf16 else jnp.float32

    # Node-tile size: a multiple of 8, no larger than (rounded-up) N, shrunk
    # until the double-buffered working set fits a conservative VMEM budget
    # (48 MiB, below v7x's 64 MiB physical VMEM).
    vmem_budget = 48 * 1024 * 1024
    tm = max(8, _round_up(min(int(node_tile), _round_up(N, 8)), 8))
    while _vmem_estimate(tm, K, C) > vmem_budget and tm > 64:
        tm = _round_up(tm // 2, 8)
    n_tiles = pl.cdiv(N, tm)
    mask_tail = (N % tm) != 0
    vmem_limit = int(min(vmem_budget,
                         max(2 * _vmem_estimate(tm, K, C), 8 * 1024 * 1024)))

    mass2d = mass.reshape(N, 1)

    kernel = functools.partial(
        _fused_diffusion_kernel, n_nodes=N, tm=tm,
        compute_dtype=compute_dtype, mask_tail=mask_tail)

    # Single fused pallas_call: leading 2-valued phase axis (analysis, synthesis).
    # x/mass are only consumed in phase 0 (their index maps pin block 0 during
    # phase 1, so they are not re-streamed); evecs is streamed in both phases;
    # coefs stays VMEM-resident; the spectrum never touches HBM.
    out = pl.pallas_call(
        kernel,
        out_shape=jax.ShapeDtypeStruct((N, C), jnp.float32),
        grid=(2, n_tiles),
        in_specs=[
            pl.BlockSpec((tm, C), lambda ph, i: ((1 - ph) * i, 0)),   # x
            pl.BlockSpec((tm, 1), lambda ph, i: ((1 - ph) * i, 0)),   # mass
            pl.BlockSpec((tm, K), lambda ph, i: (i, 0)),              # evecs
            pl.BlockSpec((K, C), lambda ph, i: (0, 0)),               # coefs (resident)
        ],
        out_specs=pl.BlockSpec((tm, C), lambda ph, i: (ph * i, 0)),
        scratch_shapes=[pltpu.VMEM((K, C), jnp.float32)],
        compiler_params=pltpu.CompilerParams(
            dimension_semantics=("arbitrary", "arbitrary"),
            vmem_limit_bytes=vmem_limit),
    )(x, mass2d, evecs, coefs)

    return out


if __name__ == "__main__":
    key = jax.random.PRNGKey(0)

    # Product of P=2 factor domains: N = 20*20 = 400 nodes, K = 8*8 = 64 eigenpairs.
    P = 2
    N, K, C = 400, 64, 16
    k_per_factor = (8, 8)

    ks = jax.random.split(key, 7)
    x = jax.random.normal(ks[0], (N, C), jnp.float32)
    evecs = jax.random.normal(ks[1], (N, K), jnp.float32) / jnp.sqrt(N)
    mass = jax.random.uniform(ks[2], (N,), jnp.float32, minval=0.5, maxval=1.5)
    evals_list = [
        jax.random.uniform(ks[3], (k_per_factor[0],), jnp.float32, minval=0.0, maxval=2.0),
        jax.random.uniform(ks[4], (k_per_factor[1],), jnp.float32, minval=0.0, maxval=2.0),
    ]
    # nn.init.uniform -> U(0, 1)
    t_multi = jax.random.uniform(ks[5], (P, C), jnp.float32, minval=0.0, maxval=1.0)
    t_single = jax.random.uniform(ks[6], (P,), jnp.float32, minval=0.0, maxval=1.0)

    def reference(coefs):
        x_spec = evecs.T @ (mass[:, None] * x)
        return evecs @ (coefs * x_spec)

    # 1) per-channel diffusion time, default tile (single node tile, no tail mask)
    out = time_derivative_diffusion_product_forward(
        t_multi, x, None, None, mass, evals_list, evecs,
        single_t=False, node_tile=512, use_bf16=True)
    out = jax.block_until_ready(out)
    ref_multi = reference(diffusion_coefs_product(t_multi, evals_list, C, False))
    assert out.shape == (N, C)
    assert jnp.all(jnp.isfinite(out))
    assert float(jnp.max(jnp.abs(out - ref_multi))) < 5e-2

    # 2) per-channel diffusion time, small tile (multi-tile grid + ragged tail mask)
    out_tiled = time_derivative_diffusion_product_forward(
        t_multi, x, None, None, mass, evals_list, evecs,
        single_t=False, node_tile=128, use_bf16=True)
    out_tiled = jax.block_until_ready(out_tiled)
    assert jnp.all(jnp.isfinite(out_tiled))
    assert float(jnp.max(jnp.abs(out_tiled - ref_multi))) < 5e-2

    # 3) shared diffusion time (single_t=True), f32 MXU path
    out_s = time_derivative_diffusion_product_forward(
        t_single, x, None, None, mass, evals_list, evecs,
        single_t=True, node_tile=128, use_bf16=False)
    out_s = jax.block_until_ready(out_s)
    ref_single = reference(diffusion_coefs_product(t_single, evals_list, C, True))
    assert jnp.all(jnp.isfinite(out_s))
    assert float(jnp.max(jnp.abs(out_s - ref_single))) < 1e-3

    print("KERNEL_OK")
</pallas_src>

<mosaic_0001>
module attributes {stable_mosaic.version = 11 : i64} {
  func.func @_fused_diffusion_kernel(%arg0: i32, %arg1: i32, %arg2: memref<400x16xf32, #tpu.memory_space<vmem>>, %arg3: memref<400x1xf32, #tpu.memory_space<vmem>>, %arg4: memref<400x64xf32, #tpu.memory_space<vmem>>, %arg5: memref<64x16xf32, #tpu.memory_space<vmem>>, %arg6: memref<400x16xf32, #tpu.memory_space<vmem>>, %arg7: memref<64x16xf32, #tpu.memory_space<vmem>>) attributes {dimension_semantics = [#tpu.dimension_semantics<arbitrary>, #tpu.dimension_semantics<arbitrary>], iteration_bounds = array<i64: 2, 1>, scalar_prefetch = 0 : i64, scratch_operands = 1 : i64, tpu.core_type = #tpu.core_type<tc>, window_params = [{transform_indices = @transform_0, window_bounds = array<i64: 400, 16>}, {transform_indices = @transform_1, window_bounds = array<i64: 400, 1>}, {transform_indices = @transform_2, window_bounds = array<i64: 400, 64>}, {pipeline_mode = #tpu.pipeline_mode<synchronous>, transform_indices = @transform_3, window_bounds = array<i64: 64, 16>}, {transform_indices = @transform_4, window_bounds = array<i64: 400, 16>}]} {
    %c0_i32 = arith.constant 0 : i32
    %0 = arith.cmpi eq, %arg0, %c0_i32 : i32
    %1 = arith.extui %0 : i1 to i32
    %c0_i32_0 = arith.constant 0 : i32
    %2 = arith.cmpi ne, %1, %c0_i32_0 : i32
    scf.if %2 {
      %c0_i32_2 = arith.constant 0 : i32
      %6 = arith.cmpi eq, %arg1, %c0_i32_2 : i32
      %7 = arith.extui %6 : i1 to i32
      %c0_i32_3 = arith.constant 0 : i32
      %8 = arith.cmpi ne, %7, %c0_i32_3 : i32
      scf.if %8 {
        %cst_15 = arith.constant 0.000000e+00 : f32
        %23 = vector.broadcast %cst_15 : f32 to vector<64x16xf32>
        %c0_16 = arith.constant 0 : index
        %c0_17 = arith.constant 0 : index
        %24 = vector.load %arg7[%c0_16, %c0_17] : memref<64x16xf32, #tpu.memory_space<vmem>>, vector<64x16xf32>
        tpu.vector_store %arg7[%c0_16, %c0_17], %23 {strides = array<i32>} : memref<64x16xf32, #tpu.memory_space<vmem>>, vector<64x16xf32>,
      } else {
      }
      %c0 = arith.constant 0 : index
      %c0_4 = arith.constant 0 : index
      %9 = vector.load %arg4[%c0, %c0_4] : memref<400x64xf32, #tpu.memory_space<vmem>>, vector<400x64xf32>
      %c0_5 = arith.constant 0 : index
      %c0_6 = arith.constant 0 : index
      %10 = vector.load %arg2[%c0_5, %c0_6] : memref<400x16xf32, #tpu.memory_space<vmem>>, vector<400x16xf32>
      %c0_7 = arith.constant 0 : index
      %c0_8 = arith.constant 0 : index
      %11 = vector.load %arg3[%c0_7, %c0_8] : memref<400x1xf32, #tpu.memory_space<vmem>>, vector<400x1xf32>
      %12 = vector.broadcast %11 : vector<400x1xf32> to vector<400x16xf32>
      %13 = arith.mulf %10, %12 : vector<400x16xf32>
      %c0_9 = arith.constant 0 : index
      %c0_10 = arith.constant 0 : index
      %14 = vector.load %arg7[%c0_9, %c0_10] : memref<64x16xf32, #tpu.memory_space<vmem>>, vector<64x16xf32>
      %15 = arith.truncf %9 : vector<400x64xf32> to vector<400x64xbf16>
      %16 = arith.truncf %13 : vector<400x16xf32> to vector<400x16xbf16>
      %cst = arith.constant dense<0.000000e+00> : vector<64x16xf32>
      %17 = tpu.matmul %15, %16, %cst {dimension_numbers = #tpu.dot_dimension_numbers<[0], [0], [1], [1], [0, 1, 1, 1], [], []>} : vector<400x64xbf16>, vector<400x16xbf16>, vector<64x16xf32> -> vector<64x16xf32>
      %18 = arith.addf %14, %17 : vector<64x16xf32>
      %c0_11 = arith.constant 0 : index
      %c0_12 = arith.constant 0 : index
      %19 = vector.load %arg7[%c0_11, %c0_12] : memref<64x16xf32, #tpu.memory_space<vmem>>, vector<64x16xf32>
      tpu.vector_store %arg7[%c0_11, %c0_12], %18 {strides = array<i32>} : memref<64x16xf32, #tpu.memory_space<vmem>>, vector<64x16xf32>,
      %c0_i32_13 = arith.constant 0 : i32
      %20 = arith.cmpi eq, %arg1, %c0_i32_13 : i32
      %21 = arith.extui %20 : i1 to i32
      %c0_i32_14 = arith.constant 0 : i32
      %22 = arith.cmpi ne, %21, %c0_i32_14 : i32
      scf.if %22 {
        %c0_15 = arith.constant 0 : index
        %c0_16 = arith.constant 0 : index
        %23 = vector.load %arg5[%c0_15, %c0_16] : memref<64x16xf32, #tpu.memory_space<vmem>>, vector<64x16xf32>
        %c0_17 = arith.constant 0 : index
        %c0_18 = arith.constant 0 : index
        %24 = vector.load %arg7[%c0_17, %c0_18] : memref<64x16xf32, #tpu.memory_space<vmem>>, vector<64x16xf32>
        %25 = arith.mulf %23, %24 : vector<64x16xf32>
        %c0_19 = arith.constant 0 : index
        %c0_20 = arith.constant 0 : index
        %26 = vector.load %arg7[%c0_19, %c0_20] : memref<64x16xf32, #tpu.memory_space<vmem>>, vector<64x16xf32>
        tpu.vector_store %arg7[%c0_19, %c0_20], %25 {strides = array<i32>} : memref<64x16xf32, #tpu.memory_space<vmem>>, vector<64x16xf32>,
      } else {
      }
    } else {
    }
    %c1_i32 = arith.constant 1 : i32
    %3 = arith.cmpi eq, %arg0, %c1_i32 : i32
    %4 = arith.extui %3 : i1 to i32
    %c0_i32_1 = arith.constant 0 : i32
    %5 = arith.cmpi ne, %4, %c0_i32_1 : i32
    scf.if %5 {
      %c0 = arith.constant 0 : index
      %c0_2 = arith.constant 0 : index
      %6 = vector.load %arg4[%c0, %c0_2] : memref<400x64xf32, #tpu.memory_space<vmem>>, vector<400x64xf32>
      %7 = arith.truncf %6 : vector<400x64xf32> to vector<400x64xbf16>
      %c0_3 = arith.constant 0 : index
      %c0_4 = arith.constant 0 : index
      %8 = vector.load %arg7[%c0_3, %c0_4] : memref<64x16xf32, #tpu.memory_space<vmem>>, vector<64x16xf32>
      %9 = arith.truncf %8 : vector<64x16xf32> to vector<64x16xbf16>
      %cst = arith.constant dense<0.000000e+00> : vector<400x16xf32>
      %10 = tpu.matmul %7, %9, %cst {dimension_numbers = #tpu.dot_dimension_numbers<[1], [0], [0], [1], [0, 0, 1, 1], [], []>} : vector<400x64xbf16>, vector<64x16xbf16>, vector<400x16xf32> -> vector<400x16xf32>
      %c0_5 = arith.constant 0 : index
      %c0_6 = arith.constant 0 : index
      %11 = vector.load %arg6[%c0_5, %c0_6] : memref<400x16xf32, #tpu.memory_space<vmem>>, vector<400x16xf32>
      tpu.vector_store %arg6[%c0_5, %c0_6], %10 {strides = array<i32>} : memref<400x16xf32, #tpu.memory_space<vmem>>, vector<400x16xf32>,
    } else {
    }
    return
  }
  func.func @transform_0(%arg0: i32, %arg1: i32) -> (i32, i32) {
    %c1_i32 = arith.constant 1 : i32
    %0 = arith.subi %c1_i32, %arg0 : i32
    %1 = arith.muli %0, %arg1 : i32
    %c0_i32 = arith.constant 0 : i32
    %c0_i32_0 = arith.constant 0 : i32
    return %1, %c0_i32 : i32, i32
  }
  func.func @transform_1(%arg0: i32, %arg1: i32) -> (i32, i32) {
    %c1_i32 = arith.constant 1 : i32
    %0 = arith.subi %c1_i32, %arg0 : i32
    %1 = arith.muli %0, %arg1 : i32
    %c0_i32 = arith.constant 0 : i32
    %c0_i32_0 = arith.constant 0 : i32
    return %1, %c0_i32 : i32, i32
  }
  func.func @transform_2(%arg0: i32, %arg1: i32) -> (i32, i32) {
    %c0_i32 = arith.constant 0 : i32
    %c0_i32_0 = arith.constant 0 : i32
    return %arg1, %c0_i32 : i32, i32
  }
  func.func @transform_3(%arg0: i32, %arg1: i32) -> (i32, i32) {
    %c0_i32 = arith.constant 0 : i32
    %c0_i32_0 = arith.constant 0 : i32
    %c0_i32_1 = arith.constant 0 : i32
    return %c0_i32, %c0_i32_0 : i32, i32
  }
  func.func @transform_4(%arg0: i32, %arg1: i32) -> (i32, i32) {
    %0 = arith.muli %arg0, %arg1 : i32
    %c0_i32 = arith.constant 0 : i32
    %c0_i32_0 = arith.constant 0 : i32
    return %0, %c0_i32 : i32, i32
  }
}

</mosaic_0001>

<llo_original>
// kernel: tpu_custom_call.1
$region0: #{tpu_custom_call.1}
  #allocation0 [shape = 'u32[]', space=smem, size = 0x4, offset = 0x4, fixed_abs, tag = 'smem constant byte address 0x4 - core index']
  #allocation1 [shape = 'u32[144,128]{1,0:T(1,128)}', space=vmem, size = 0x12000, scoped, tag = 'internal scratch']
  #allocation2 [shape = 'f32[64,16]{1,0:T(8,128)}', space=vmem, size = 0x8000, scoped, tag = 'scratch operand']
  %s0 = inlined_call_operand.vmem [shape: f32[400,16], index: 0, kind: input, shape index: {}]
  %s1 = inlined_call_operand.vmem [shape: f32[400,1], index: 1, kind: input, shape index: {}]
  %s2 = inlined_call_operand.vmem [shape: f32[400,64], index: 2, kind: input, shape index: {}]
  %s3 = inlined_call_operand.vmem [shape: f32[64,16], index: 3, kind: input, shape index: {}]
  %s4 = inlined_call_operand.vmem [shape: f32[400,16], index: 4, kind: output, shape index: {}]
  %s5 = sld [smem:[#allocation0]]
  $region65: #{tpu_custom_call.1} parent=0
    _
  %s7 = ssub.s32 1, %s5
  %s8 = scalar_select 0, %s7, %s5
  loop: start=0, step=1, limit=4
  $region2: #{tpu_custom_call.1} parent=0 // loop_pre_header
    _
  $region3: #{tpu_custom_call.1} parent=0 // loop_header
    %s10 = sphi 0, %s14
    %p11 = scmp.ge.s32.totalorder %s10, 4
    %s17 = sphi 0, %s29
    %s18 = sphi 0, %s25
    %s19 = sphi 0, %s17
    %s20 = sphi 0, %s18
    %s21 = sphi 0, %s19
    %s22 = sphi 0, %s20
    %s36 = sphi 0, %s38
    %s39 = sphi 0, %s36
    %s40 = sphi 0, %s39
    %s56 = sphi 0, %s40
    %s66 = sphi 0, %s68
    %s69 = sphi 0, %s66
    %s70 = sphi 0, %s69
    %s86 = sphi 0, %s70
    %s92 = sphi 0, %s94
    %s95 = sphi 0, %s92
    %s96 = sphi 0, %s95
    %s112 = sphi 0, %s96
    %s116 = sphi 0, %s116
    %s118 = sphi 0, %s116
    %s119 = sphi 0, %s118
    %s133 = sphi 0, %s119
    %s141 = sphi 0, %s143
    %s144 = sphi 0, %s141
    %s145 = sphi 0, %s144
    %s161 = sphi 0, %s145
  $region4: #{tpu_custom_call.1} parent=0 // loop_header_branch
    %13 = sbr.rel (%p11) target = $region8
  $region5: #{tpu_custom_call.1} parent=0 // loop_body
    %s15 = ssub.s32 %s10, 1
    %s16 = ssub.s32 %s10, 2
    %s23 = sadd.s32 1, %s18
    %p24 = scmp.ge.s32.totalorder %s23, 1
    %s25 = scalar_select %p24, 0, %s23
    %s26 = sadd.s32 1, %s17
    %s27 = scalar_select %p24, %s26, %s17
    %p28 = scmp.ge.s32.totalorder %s27, 2
    %s29 = scalar_select %p28, 0, %s27
    %s30 = ssub.s32 1, %s17
    %s31 = smul.u32 %s30, %s18
    %s32 = ssub.s32 1, %s29
    %s33 = smul.u32 %s32, %s25
    %s34 = ssub.s32 %s31, %s33
    %p35 = scmp.eq.s32.totalorder %s34, 0
    %s37 = sadd.s32 %s36, 1
    %s38 = scalar_select %p35, %s36, %s37
    %p41 = pneg %p35
    %p42 = scmp.eq.s32.totalorder %s10, 1
    %p43 = por %p41, %p42
    %p44 = scmp.ne.s32.totalorder %s36, %s39
    %p45 = scmp.eq.s32.totalorder %s10, 0
    %p46 = por %p44, %p45
    %p47 = scmp.ne.s32.totalorder %s36, %s39
    %p48 = scmp.eq.s32.totalorder %s15, 1
    %p49 = por %p47, %p48
    %p50 = scmp.ne.s32.totalorder %s39, %s40
    %p51 = scmp.eq.s32.totalorder %s15, 0
    %p52 = por %p50, %p51
    %p53 = scmp.ne.s32.totalorder %s39, %s40
    %p54 = scmp.eq.s32.totalorder %s16, 1
    %p55 = por %p53, %p54
    %p57 = scmp.ne.s32.totalorder %s40, %s56
    %p58 = scmp.eq.s32.totalorder %s16, 0
    %p59 = por %p57, %p58
    %s60 = ssub.s32 1, %s17
    %s61 = smul.u32 %s60, %s18
    %s62 = ssub.s32 1, %s29
    %s63 = smul.u32 %s62, %s25
    %s64 = ssub.s32 %s61, %s63
    %p65 = scmp.eq.s32.totalorder %s64, 0
    %s67 = sadd.s32 %s66, 1
    %s68 = scalar_select %p65, %s66, %s67
    %p71 = pneg %p65
    %p72 = scmp.eq.s32.totalorder %s10, 1
    %p73 = por %p71, %p72
    %p74 = scmp.ne.s32.totalorder %s66, %s69
    %p75 = scmp.eq.s32.totalorder %s10, 0
    %p76 = por %p74, %p75
    %p77 = scmp.ne.s32.totalorder %s66, %s69
    %p78 = scmp.eq.s32.totalorder %s15, 1
    %p79 = por %p77, %p78
    %p80 = scmp.ne.s32.totalorder %s69, %s70
    %p81 = scmp.eq.s32.totalorder %s15, 0
    %p82 = por %p80, %p81
    %p83 = scmp.ne.s32.totalorder %s69, %s70
    %p84 = scmp.eq.s32.totalorder %s16, 1
    %p85 = por %p83, %p84
    %p87 = scmp.ne.s32.totalorder %s70, %s86
    %p88 = scmp.eq.s32.totalorder %s16, 0
    %p89 = por %p87, %p88
    %s90 = ssub.s32 %s18, %s25
    %p91 = scmp.eq.s32.totalorder %s90, 0
    %s93 = sadd.s32 %s92, 1
    %s94 = scalar_select %p91, %s92, %s93
    %p97 = pneg %p91
    %p98 = scmp.eq.s32.totalorder %s10, 1
    %p99 = por %p97, %p98
    %p100 = scmp.ne.s32.totalorder %s92, %s95
    %p101 = scmp.eq.s32.totalorder %s10, 0
    %p102 = por %p100, %p101
    %p103 = scmp.ne.s32.totalorder %s92, %s95
    %p104 = scmp.eq.s32.totalorder %s15, 1
    %p105 = por %p103, %p104
    %p106 = scmp.ne.s32.totalorder %s95, %s96
    %p107 = scmp.eq.s32.totalorder %s15, 0
    %p108 = por %p106, %p107
    %p109 = scmp.ne.s32.totalorder %s95, %s96
    %p110 = scmp.eq.s32.totalorder %s16, 1
    %p111 = por %p109, %p110
    %p113 = scmp.ne.s32.totalorder %s96, %s112
    %p114 = scmp.eq.s32.totalorder %s16, 0
    %p115 = por %p113, %p114
    %s117 = sadd.s32 %s116, 1
    %p120 = scmp.eq.s32.totalorder %s10, 1
    %p121 = scmp.ne.s32.totalorder %s116, %s118
    %p122 = scmp.eq.s32.totalorder %s10, 0
    %p123 = por %p121, %p122
    %p124 = scmp.ne.s32.totalorder %s116, %s118
    %p125 = scmp.eq.s32.totalorder %s15, 1
    %p126 = por %p124, %p125
    %p127 = scmp.ne.s32.totalorder %s118, %s119
    %p128 = scmp.eq.s32.totalorder %s15, 0
    %p129 = por %p127, %p128
    %p130 = scmp.ne.s32.totalorder %s118, %s119
    %p131 = scmp.eq.s32.totalorder %s16, 1
    %p132 = por %p130, %p131
    %p134 = scmp.ne.s32.totalorder %s119, %s133
    %p135 = scmp.eq.s32.totalorder %s16, 0
    %p136 = por %p134, %p135
    %s137 = smul.u32 %s17, %s18
    %s138 = smul.u32 %s29, %s25
    %s139 = ssub.s32 %s137, %s138
    %p140 = scmp.eq.s32.totalorder %s139, 0
    %s142 = sadd.s32 %s141, 1
    %s143 = scalar_select %p140, %s141, %s142
    %p146 = pneg %p140
    %p147 = scmp.eq.s32.totalorder %s10, 1
    %p148 = por %p146, %p147
    %p149 = scmp.ne.s32.totalorder %s141, %s144
    %p150 = scmp.eq.s32.totalorder %s10, 0
    %p151 = por %p149, %p150
    %p152 = scmp.ne.s32.totalorder %s141, %s144
    %p153 = scmp.eq.s32.totalorder %s15, 1
    %p154 = por %p152, %p153
    %p155 = scmp.ne.s32.totalorder %s144, %s145
    %p156 = scmp.eq.s32.totalorder %s15, 0
    %p157 = por %p155, %p156
    %p158 = scmp.ne.s32.totalorder %s144, %s145
    %p159 = scmp.eq.s32.totalorder %s16, 1
    %p160 = por %p158, %p159
    %p162 = scmp.ne.s32.totalorder %s145, %s161
    %p163 = scmp.eq.s32.totalorder %s16, 0
    %p164 = por %p162, %p163
    %p165 = scmp.le.s32.totalorder 1, %s10
    %p166 = scmp.lt.s32.totalorder %s10, 3
    %p167 = pnand %p165, %p166
    %p168 = pneg %p167
    // Predicated region
    $region9: #{tpu_custom_call.1} parent=5 // pred_check
      _
    $region10: #{tpu_custom_call.1} parent=5 // pred_check_branch
      %170 = sbr.rel (%p167) target = $region12
    $region11: #{tpu_custom_call.1} parent=5 // pred_region
      %s171 = ssub.s32 %s10, 1
      // Predicated region
      $region13: #{tpu_custom_call.1} parent=11 // pred_check
        %p172 = pneg %p108
      $region14: #{tpu_custom_call.1} parent=11 // pred_check_branch
        %174 = sbr.rel (%p172) target = $region16
      $region15: #{tpu_custom_call.1} parent=11 // pred_region
        %s175 = smul.u32 50, %s20
        %p176 = scmp.lt.s32.totalorder %s175, 49
        %s177 = scalar_select %p176, %s175, 49
        %s178 = smul.addr %s177, 8
        %s179 = scalar_lea.vmem %s2, %s178
        %s180 = smul.u32 50, %s20
      $region16: #{tpu_custom_call.1} parent=11 // pred_fallthru
        _
      // Predicated region
      $region17: #{tpu_custom_call.1} parent=11 // pred_check
        %p181 = pneg %p129
      $region18: #{tpu_custom_call.1} parent=11 // pred_check_branch
        %183 = sbr.rel (%p181) target = $region20
      $region19: #{tpu_custom_call.1} parent=11 // pred_region
        _
      $region20: #{tpu_custom_call.1} parent=11 // pred_fallthru
        _
    $region12: #{tpu_custom_call.1} parent=5 // pred_fallthru
      _
    %p184 = scmp.lt.s32.totalorder %s10, 2
    // Predicated region
    $region21: #{tpu_custom_call.1} parent=5 // pred_check
      %p185 = pneg %p184
    $region22: #{tpu_custom_call.1} parent=5 // pred_check_branch
      %187 = sbr.rel (%p185) target = $region24
    $region23: #{tpu_custom_call.1} parent=5 // pred_region
      // Predicated region
      $region25: #{tpu_custom_call.1} parent=23 // pred_check
        %p188 = pneg %p46
      $region26: #{tpu_custom_call.1} parent=23 // pred_check_branch
        %190 = sbr.rel (%p188) target = $region28
      $region27: #{tpu_custom_call.1} parent=23 // pred_region
        %s191 = ssub.s32 1, %s17
        %s192 = smul.u32 %s191, %s18
        %s193 = smul.u32 50, %s192
        %p194 = scmp.lt.s32.totalorder %s193, 49
        %s195 = scalar_select %p194, %s193, 49
        %s196 = smul.addr %s195, 8
        %s197 = scalar_lea.vmem %s0, %s196
        %s198 = ssub.s32 1, %s17
        %s199 = smul.u32 %s198, %s18
        %s200 = smul.u32 50, %s199
      $region28: #{tpu_custom_call.1} parent=23 // pred_fallthru
        _
      // Predicated region
      $region29: #{tpu_custom_call.1} parent=23 // pred_check
        %p201 = pneg %p76
      $region30: #{tpu_custom_call.1} parent=23 // pred_check_branch
        %203 = sbr.rel (%p201) target = $region32
      $region31: #{tpu_custom_call.1} parent=23 // pred_region
        %s204 = ssub.s32 1, %s17
        %s205 = smul.u32 %s204, %s18
        %s206 = smul.u32 50, %s205
        %p207 = scmp.lt.s32.totalorder %s206, 49
        %s208 = scalar_select %p207, %s206, 49
        %s209 = smul.addr %s208, 8
        %s210 = scalar_lea.vmem %s1, %s209
        %s211 = ssub.s32 1, %s17
        %s212 = smul.u32 %s211, %s18
        %s213 = smul.u32 50, %s212
      $region32: #{tpu_custom_call.1} parent=23 // pred_fallthru
        _
    $region24: #{tpu_custom_call.1} parent=5 // pred_fallthru
      _
    %p214 = scmp.le.s32.totalorder 1, %s10
    %p215 = scmp.lt.s32.totalorder %s10, 3
    %p216 = pnand %p214, %p215
    %p217 = pneg %p216
    // Predicated region
    $region33: #{tpu_custom_call.1} parent=5 // pred_check
      _
    $region34: #{tpu_custom_call.1} parent=5 // pred_check_branch
      %219 = sbr.rel (%p216) target = $region36
    $region35: #{tpu_custom_call.1} parent=5 // pred_region
      %s220 = ssub.s32 %s10, 1
      %s221 = ssub.s32 1, %s19
      %s222 = smul.u32 %s221, %s20
      %s223 = smul.u32 50, %s222
      %p224 = scmp.lt.s32.totalorder %s223, 49
      %s225 = scalar_select %p224, %s223, 49
      %s226 = smul.addr %s225, 8
      %s227 = scalar_lea.vmem %s0, %s226
      %p228 = pneg %p52
      %p229 = pneg %p49
      %s230 = ssub.s32 1, %s19
      %s231 = smul.u32 %s230, %s20
      %s232 = smul.u32 50, %s231
      %p233 = scmp.lt.s32.totalorder %s232, 49
      %s234 = scalar_select %p233, %s232, 49
      %s235 = smul.addr %s234, 8
      %s236 = scalar_lea.vmem %s1, %s235
      %p237 = pneg %p82
      %p238 = pneg %p79
      %s239 = smul.u32 50, %s20
      %p240 = scmp.lt.s32.totalorder %s239, 49
      %s241 = scalar_select %p240, %s239, 49
      %s242 = smul.addr %s241, 8
      %s243 = scalar_lea.vmem %s2, %s242
      %p244 = pneg %p108
      %p245 = pneg %p105
      %p246 = pneg %p129
      %p247 = pneg %p126
      %p248 = pneg %p157
      %p249 = pneg %p154
      %s250 = smul.u32 %s19, %s20
      %s251 = smul.u32 50, %s250
      %p252 = scmp.lt.s32.totalorder %s251, 49
      %s253 = scalar_select %p252, %s251, 49
      %s254 = smul.addr %s253, 8
      %s255 = scalar_lea.vmem %s4, %s254
      %s256 = ssub.s32 1, %s19
      %s257 = smul.u32 %s256, %s20
      %s258 = smul.u32 50, %s257
      %p259 = scmp.lt.s32.totalorder %s258, 49
      %s260 = scalar_select %p259, %s258, 49
      %s261 = smul.addr %s260, 8
      %s262 = scalar_lea.vmem %s0, %s261
      %s263 = ssub.s32 1, %s19
      %s264 = smul.u32 %s263, %s20
      %s265 = smul.u32 50, %s264
      %s266 = ssub.s32 1, %s19
      %s267 = smul.u32 %s266, %s20
      %s268 = smul.u32 50, %s267
      %p269 = scmp.lt.s32.totalorder %s268, 49
      %s270 = scalar_select %p269, %s268, 49
      %s271 = smul.addr %s270, 8
      %s272 = scalar_lea.vmem %s1, %s271
      %s273 = ssub.s32 1, %s19
      %s274 = smul.u32 %s273, %s20
      %s275 = smul.u32 50, %s274
      %s276 = smul.u32 50, %s20
      %p277 = scmp.lt.s32.totalorder %s276, 49
      %s278 = scalar_select %p277, %s276, 49
      %s279 = smul.addr %s278, 8
      %s280 = scalar_lea.vmem %s2, %s279
      %s281 = smul.u32 50, %s20
      %s282 = smul.u32 %s19, %s20
      %s283 = smul.u32 50, %s282
      %p284 = scmp.lt.s32.totalorder %s283, 49
      %s285 = scalar_select %p284, %s283, 49
      %s286 = smul.addr %s285, 8
      %s287 = scalar_lea.vmem %s4, %s286
      %s288 = smul.u32 %s19, %s20
      %s289 = smul.u32 50, %s288
      %p291 = scmp.eq.s32.totalorder %s19, 0
      // Predicated region
      $region37: #{tpu_custom_call.1} parent=35 // pred_check
        %p292 = pneg %p291
      $region38: #{tpu_custom_call.1} parent=35 // pred_check_branch
        %294 = sbr.rel (%p292) target = $region40
      $region39: #{tpu_custom_call.1} parent=35 // pred_region
        %p295 = scmp.eq.s32.totalorder %s20, 0
        // Predicated region
        $region41: #{tpu_custom_call.1} parent=39 // pred_check
          %p296 = pneg %p295
        $region42: #{tpu_custom_call.1} parent=39 // pred_check_branch
          %298 = sbr.rel (%p296) target = $region44
        $region43: #{tpu_custom_call.1} parent=39 // pred_region
          %vm299 = vcmask 130048
          %300 = vst.msk [vmem:[#allocation2] sm:$0xff] %vm299, 0.0
          %301 = vst.msk [vmem:[#allocation2 + $0x8] sm:$0xff] %vm299, 0.0
          %302 = vst.msk [vmem:[#allocation2 + $0x10] sm:$0xff] %vm299, 0.0
          %303 = vst.msk [vmem:[#allocation2 + $0x18] sm:$0xff] %vm299, 0.0
          %304 = vst.msk [vmem:[#allocation2 + $0x20] sm:$0xff] %vm299, 0.0
          %305 = vst.msk [vmem:[#allocation2 + $0x28] sm:$0xff] %vm299, 0.0
          %306 = vst.msk [vmem:[#allocation2 + $0x30] sm:$0xff] %vm299, 0.0
          %307 = vst.msk [vmem:[#allocation2 + $0x38] sm:$0xff] %vm299, 0.0
        $region44: #{tpu_custom_call.1} parent=39 // pred_fallthru
          _
        %v308 = vld [vmem:[%s280] sm:$0xff]
        %v309 = vld [vmem:[%s280 + $0x8] sm:$0xff]
        %v310 = vld [vmem:[%s280 + $0x10] sm:$0xff]
        %v311 = vld [vmem:[%s280 + $0x18] sm:$0xff]
        %v312 = vld [vmem:[%s280 + $0x20] sm:$0xff]
        %v313 = vld [vmem:[%s280 + $0x28] sm:$0xff]
        %v314 = vld [vmem:[%s280 + $0x30] sm:$0xff]
        %v315 = vld [vmem:[%s280 + $0x38] sm:$0xff]
        %v316 = vld [vmem:[%s280 + $0x40] sm:$0xff]
        %v317 = vld [vmem:[%s280 + $0x48] sm:$0xff]
        %v318 = vld [vmem:[%s280 + $0x50] sm:$0xff]
        %v319 = vld [vmem:[%s280 + $0x58] sm:$0xff]
        %v320 = vld [vmem:[%s280 + $0x60] sm:$0xff]
        %v321 = vld [vmem:[%s280 + $0x68] sm:$0xff]
        %v322 = vld [vmem:[%s280 + $0x70] sm:$0xff]
        %v323 = vld [vmem:[%s280 + $0x78] sm:$0xff]
        %v324 = vld [vmem:[%s280 + $0x80] sm:$0xff]
        %v325 = vld [vmem:[%s280 + $0x88] sm:$0xff]
        %v326 = vld [vmem:[%s280 + $0x90] sm:$0xff]
        %v327 = vld [vmem:[%s280 + $0x98] sm:$0xff]
        %v328 = vld [vmem:[%s280 + $0xa0] sm:$0xff]
        %v329 = vld [vmem:[%s280 + $0xa8] sm:$0xff]
        %v330 = vld [vmem:[%s280 + $0xb0] sm:$0xff]
        %v331 = vld [vmem:[%s280 + $0xb8] sm:$0xff]
        %v332 = vld [vmem:[%s280 + $0xc0] sm:$0xff]
        %v333 = vld [vmem:[%s280 + $0xc8] sm:$0xff]
        %v334 = vld [vmem:[%s280 + $0xd0] sm:$0xff]
        %v335 = vld [vmem:[%s280 + $0xd8] sm:$0xff]
        %v336 = vld [vmem:[%s280 + $0xe0] sm:$0xff]
        %v337 = vld [vmem:[%s280 + $0xe8] sm:$0xff]
        %v338 = vld [vmem:[%s280 + $0xf0] sm:$0xff]
        %v339 = vld [vmem:[%s280 + $0xf8] sm:$0xff]
        %v340 = vld [vmem:[%s280 + $0x100] sm:$0xff]
        %v341 = vld [vmem:[%s280 + $0x108] sm:$0xff]
        %v342 = vld [vmem:[%s280 + $0x110] sm:$0xff]
        %v343 = vld [vmem:[%s280 + $0x118] sm:$0xff]
        %v344 = vld [vmem:[%s280 + $0x120] sm:$0xff]
        %v345 = vld [vmem:[%s280 + $0x128] sm:$0xff]
        %v346 = vld [vmem:[%s280 + $0x130] sm:$0xff]
        %v347 = vld [vmem:[%s280 + $0x138] sm:$0xff]
        %v348 = vld [vmem:[%s280 + $0x140] sm:$0xff]
        %v349 = vld [vmem:[%s280 + $0x148] sm:$0xff]
        %v350 = vld [vmem:[%s280 + $0x150] sm:$0xff]
        %v351 = vld [vmem:[%s280 + $0x158] sm:$0xff]
        %v352 = vld [vmem:[%s280 + $0x160] sm:$0xff]
        %v353 = vld [vmem:[%s280 + $0x168] sm:$0xff]
        %v354 = vld [vmem:[%s280 + $0x170] sm:$0xff]
        %v355 = vld [vmem:[%s280 + $0x178] sm:$0xff]
        %v356 = vld [vmem:[%s280 + $0x180] sm:$0xff]
        %v357 = vld [vmem:[%s280 + $0x188] sm:$0xff]
        %v358 = vld [vmem:[%s262] sm:$0xff]
        %v359 = vld [vmem:[%s262 + $0x8] sm:$0xff]
        %v360 = vld [vmem:[%s262 + $0x10] sm:$0xff]
        %v361 = vld [vmem:[%s262 + $0x18] sm:$0xff]
        %v362 = vld [vmem:[%s262 + $0x20] sm:$0xff]
        %v363 = vld [vmem:[%s262 + $0x28] sm:$0xff]
        %v364 = vld [vmem:[%s262 + $0x30] sm:$0xff]
        %v365 = vld [vmem:[%s262 + $0x38] sm:$0xff]
        %v366 = vld [vmem:[%s262 + $0x40] sm:$0xff]
        %v367 = vld [vmem:[%s262 + $0x48] sm:$0xff]
        %v368 = vld [vmem:[%s262 + $0x50] sm:$0xff]
        %v369 = vld [vmem:[%s262 + $0x58] sm:$0xff]
        %v370 = vld [vmem:[%s262 + $0x60] sm:$0xff]
        %v371 = vld [vmem:[%s262 + $0x68] sm:$0xff]
        %v372 = vld [vmem:[%s262 + $0x70] sm:$0xff]
        %v373 = vld [vmem:[%s262 + $0x78] sm:$0xff]
        %v374 = vld [vmem:[%s262 + $0x80] sm:$0xff]
        %v375 = vld [vmem:[%s262 + $0x88] sm:$0xff]
        %v376 = vld [vmem:[%s262 + $0x90] sm:$0xff]
        %v377 = vld [vmem:[%s262 + $0x98] sm:$0xff]
        %v378 = vld [vmem:[%s262 + $0xa0] sm:$0xff]
        %v379 = vld [vmem:[%s262 + $0xa8] sm:$0xff]
        %v380 = vld [vmem:[%s262 + $0xb0] sm:$0xff]
        %v381 = vld [vmem:[%s262 + $0xb8] sm:$0xff]
        %v382 = vld [vmem:[%s262 + $0xc0] sm:$0xff]
        %v383 = vld [vmem:[%s262 + $0xc8] sm:$0xff]
        %v384 = vld [vmem:[%s262 + $0xd0] sm:$0xff]
        %v385 = vld [vmem:[%s262 + $0xd8] sm:$0xff]
        %v386 = vld [vmem:[%s262 + $0xe0] sm:$0xff]
        %v387 = vld [vmem:[%s262 + $0xe8] sm:$0xff]
        %v388 = vld [vmem:[%s262 + $0xf0] sm:$0xff]
        %v389 = vld [vmem:[%s262 + $0xf8] sm:$0xff]
        %v390 = vld [vmem:[%s262 + $0x100] sm:$0xff]
        %v391 = vld [vmem:[%s262 + $0x108] sm:$0xff]
        %v392 = vld [vmem:[%s262 + $0x110] sm:$0xff]
        %v393 = vld [vmem:[%s262 + $0x118] sm:$0xff]
        %v394 = vld [vmem:[%s262 + $0x120] sm:$0xff]
        %v395 = vld [vmem:[%s262 + $0x128] sm:$0xff]
        %v396 = vld [vmem:[%s262 + $0x130] sm:$0xff]
        %v397 = vld [vmem:[%s262 + $0x138] sm:$0xff]
        %v398 = vld [vmem:[%s262 + $0x140] sm:$0xff]
        %v399 = vld [vmem:[%s262 + $0x148] sm:$0xff]
        %v400 = vld [vmem:[%s262 + $0x150] sm:$0xff]
        %v401 = vld [vmem:[%s262 + $0x158] sm:$0xff]
        %v402 = vld [vmem:[%s262 + $0x160] sm:$0xff]
        %v403 = vld [vmem:[%s262 + $0x168] sm:$0xff]
        %v404 = vld [vmem:[%s262 + $0x170] sm:$0xff]
        %v405 = vld [vmem:[%s262 + $0x178] sm:$0xff]
        %v406 = vld [vmem:[%s262 + $0x180] sm:$0xff]
        %v407 = vld [vmem:[%s262 + $0x188] sm:$0xff]
        %v408 = vld [vmem:[%s272] sm:$0xff]
        %v409 = vld [vmem:[%s272 + $0x8] sm:$0xff]
        %v410 = vld [vmem:[%s272 + $0x10] sm:$0xff]
        %v411 = vld [vmem:[%s272 + $0x18] sm:$0xff]
        %v412 = vld [vmem:[%s272 + $0x20] sm:$0xff]
        %v413 = vld [vmem:[%s272 + $0x28] sm:$0xff]
        %v414 = vld [vmem:[%s272 + $0x30] sm:$0xff]
        %v415 = vld [vmem:[%s272 + $0x38] sm:$0xff]
        %v416 = vld [vmem:[%s272 + $0x40] sm:$0xff]
        %v417 = vld [vmem:[%s272 + $0x48] sm:$0xff]
        %v418 = vld [vmem:[%s272 + $0x50] sm:$0xff]
        %v419 = vld [vmem:[%s272 + $0x58] sm:$0xff]
        %v420 = vld [vmem:[%s272 + $0x60] sm:$0xff]
        %v421 = vld [vmem:[%s272 + $0x68] sm:$0xff]
        %v422 = vld [vmem:[%s272 + $0x70] sm:$0xff]
        %v423 = vld [vmem:[%s272 + $0x78] sm:$0xff]
        %v424 = vld [vmem:[%s272 + $0x80] sm:$0xff]
        %v425 = vld [vmem:[%s272 + $0x88] sm:$0xff]
        %v426 = vld [vmem:[%s272 + $0x90] sm:$0xff]
        %v427 = vld [vmem:[%s272 + $0x98] sm:$0xff]
        %v428 = vld [vmem:[%s272 + $0xa0] sm:$0xff]
        %v429 = vld [vmem:[%s272 + $0xa8] sm:$0xff]
        %v430 = vld [vmem:[%s272 + $0xb0] sm:$0xff]
        %v431 = vld [vmem:[%s272 + $0xb8] sm:$0xff]
        %v432 = vld [vmem:[%s272 + $0xc0] sm:$0xff]
        %v433 = vld [vmem:[%s272 + $0xc8] sm:$0xff]
        %v434 = vld [vmem:[%s272 + $0xd0] sm:$0xff]
        %v435 = vld [vmem:[%s272 + $0xd8] sm:$0xff]
        %v436 = vld [vmem:[%s272 + $0xe0] sm:$0xff]
        %v437 = vld [vmem:[%s272 + $0xe8] sm:$0xff]
        %v438 = vld [vmem:[%s272 + $0xf0] sm:$0xff]
        %v439 = vld [vmem:[%s272 + $0xf8] sm:$0xff]
        %v440 = vld [vmem:[%s272 + $0x100] sm:$0xff]
        %v441 = vld [vmem:[%s272 + $0x108] sm:$0xff]
        %v442 = vld [vmem:[%s272 + $0x110] sm:$0xff]
        %v443 = vld [vmem:[%s272 + $0x118] sm:$0xff]
        %v444 = vld [vmem:[%s272 + $0x120] sm:$0xff]
        %v445 = vld [vmem:[%s272 + $0x128] sm:$0xff]
        %v446 = vld [vmem:[%s272 + $0x130] sm:$0xff]
        %v447 = vld [vmem:[%s272 + $0x138] sm:$0xff]
        %v448 = vld [vmem:[%s272 + $0x140] sm:$0xff]
        %v449 = vld [vmem:[%s272 + $0x148] sm:$0xff]
        %v450 = vld [vmem:[%s272 + $0x150] sm:$0xff]
        %v451 = vld [vmem:[%s272 + $0x158] sm:$0xff]
        %v452 = vld [vmem:[%s272 + $0x160] sm:$0xff]
        %v453 = vld [vmem:[%s272 + $0x168] sm:$0xff]
        %v454 = vld [vmem:[%s272 + $0x170] sm:$0xff]
        %v455 = vld [vmem:[%s272 + $0x178] sm:$0xff]
        %v456 = vld [vmem:[%s272 + $0x180] sm:$0xff]
        %v457 = vld [vmem:[%s272 + $0x188] sm:$0xff]
        %459 = vset.pattern.permute.xlu0 0
        %460 = vperm.xlu0 %459, %v408
        %v461 = vpop.permute.xlu0 %460
        %464 = vset.pattern.permute.xlu0 0
        %465 = vperm.xlu0 %464, %v409
        %v466 = vpop.permute.xlu0 %465
        %469 = vset.pattern.permute.xlu0 0
        %470 = vperm.xlu0 %469, %v410
        %v471 = vpop.permute.xlu0 %470
        %474 = vset.pattern.permute.xlu0 0
        %475 = vperm.xlu0 %474, %v411
        %v476 = vpop.permute.xlu0 %475
        %479 = vset.pattern.permute.xlu0 0
        %480 = vperm.xlu0 %479, %v412
        %v481 = vpop.permute.xlu0 %480
        %484 = vset.pattern.permute.xlu0 0
        %485 = vperm.xlu0 %484, %v413
        %v486 = vpop.permute.xlu0 %485
        %489 = vset.pattern.permute.xlu0 0
        %490 = vperm.xlu0 %489, %v414
        %v491 = vpop.permute.xlu0 %490
        %494 = vset.pattern.permute.xlu0 0
        %495 = vperm.xlu0 %494, %v415
        %v496 = vpop.permute.xlu0 %495
        %499 = vset.pattern.permute.xlu0 0
        %500 = vperm.xlu0 %499, %v416
        %v501 = vpop.permute.xlu0 %500
        %504 = vset.pattern.permute.xlu0 0
        %505 = vperm.xlu0 %504, %v417
        %v506 = vpop.permute.xlu0 %505
        %509 = vset.pattern.permute.xlu0 0
        %510 = vperm.xlu0 %509, %v418
        %v511 = vpop.permute.xlu0 %510
        %514 = vset.pattern.permute.xlu0 0
        %515 = vperm.xlu0 %514, %v419
        %v516 = vpop.permute.xlu0 %515
        %519 = vset.pattern.permute.xlu0 0
        %520 = vperm.xlu0 %519, %v420
        %v521 = vpop.permute.xlu0 %520
        %524 = vset.pattern.permute.xlu0 0
        %525 = vperm.xlu0 %524, %v421
        %v526 = vpop.permute.xlu0 %525
        %529 = vset.pattern.permute.xlu0 0
        %530 = vperm.xlu0 %529, %v422
        %v531 = vpop.permute.xlu0 %530
        %534 = vset.pattern.permute.xlu0 0
        %535 = vperm.xlu0 %534, %v423
        %v536 = vpop.permute.xlu0 %535
        %539 = vset.pattern.permute.xlu0 0
        %540 = vperm.xlu0 %539, %v424
        %v541 = vpop.permute.xlu0 %540
        %544 = vset.pattern.permute.xlu0 0
        %545 = vperm.xlu0 %544, %v425
        %v546 = vpop.permute.xlu0 %545
        %549 = vset.pattern.permute.xlu0 0
        %550 = vperm.xlu0 %549, %v426
        %v551 = vpop.permute.xlu0 %550
        %554 = vset.pattern.permute.xlu0 0
        %555 = vperm.xlu0 %554, %v427
        %v556 = vpop.permute.xlu0 %555
        %559 = vset.pattern.permute.xlu0 0
        %560 = vperm.xlu0 %559, %v428
        %v561 = vpop.permute.xlu0 %560
        %564 = vset.pattern.permute.xlu0 0
        %565 = vperm.xlu0 %564, %v429
        %v566 = vpop.permute.xlu0 %565
        %569 = vset.pattern.permute.xlu0 0
        %570 = vperm.xlu0 %569, %v430
        %v571 = vpop.permute.xlu0 %570
        %574 = vset.pattern.permute.xlu0 0
        %575 = vperm.xlu0 %574, %v431
        %v576 = vpop.permute.xlu0 %575
        %579 = vset.pattern.permute.xlu0 0
        %580 = vperm.xlu0 %579, %v432
        %v581 = vpop.permute.xlu0 %580
        %584 = vset.pattern.permute.xlu0 0
        %585 = vperm.xlu0 %584, %v433
        %v586 = vpop.permute.xlu0 %585
        %589 = vset.pattern.permute.xlu0 0
        %590 = vperm.xlu0 %589, %v434
        %v591 = vpop.permute.xlu0 %590
        %594 = vset.pattern.permute.xlu0 0
        %595 = vperm.xlu0 %594, %v435
        %v596 = vpop.permute.xlu0 %595
        %599 = vset.pattern.permute.xlu0 0
        %600 = vperm.xlu0 %599, %v436
        %v601 = vpop.permute.xlu0 %600
        %604 = vset.pattern.permute.xlu0 0
        %605 = vperm.xlu0 %604, %v437
        %v606 = vpop.permute.xlu0 %605
        %609 = vset.pattern.permute.xlu0 0
        %610 = vperm.xlu0 %609, %v438
        %v611 = vpop.permute.xlu0 %610
        %614 = vset.pattern.permute.xlu0 0
        %615 = vperm.xlu0 %614, %v439
        %v616 = vpop.permute.xlu0 %615
        %619 = vset.pattern.permute.xlu0 0
        %620 = vperm.xlu0 %619, %v440
        %v621 = vpop.permute.xlu0 %620
        %624 = vset.pattern.permute.xlu0 0
        %625 = vperm.xlu0 %624, %v441
        %v626 = vpop.permute.xlu0 %625
        %629 = vset.pattern.permute.xlu0 0
        %630 = vperm.xlu0 %629, %v442
        %v631 = vpop.permute.xlu0 %630
        %634 = vset.pattern.permute.xlu0 0
        %635 = vperm.xlu0 %634, %v443
        %v636 = vpop.permute.xlu0 %635
        %639 = vset.pattern.permute.xlu0 0
        %640 = vperm.xlu0 %639, %v444
        %v641 = vpop.permute.xlu0 %640
        %644 = vset.pattern.permute.xlu0 0
        %645 = vperm.xlu0 %644, %v445
        %v646 = vpop.permute.xlu0 %645
        %649 = vset.pattern.permute.xlu0 0
        %650 = vperm.xlu0 %649, %v446
        %v651 = vpop.permute.xlu0 %650
        %654 = vset.pattern.permute.xlu0 0
        %655 = vperm.xlu0 %654, %v447
        %v656 = vpop.permute.xlu0 %655
        %659 = vset.pattern.permute.xlu0 0
        %660 = vperm.xlu0 %659, %v448
        %v661 = vpop.permute.xlu0 %660
        %664 = vset.pattern.permute.xlu0 0
        %665 = vperm.xlu0 %664, %v449
        %v666 = vpop.permute.xlu0 %665
        %669 = vset.pattern.permute.xlu0 0
        %670 = vperm.xlu0 %669, %v450
        %v671 = vpop.permute.xlu0 %670
        %674 = vset.pattern.permute.xlu0 0
        %675 = vperm.xlu0 %674, %v451
        %v676 = vpop.permute.xlu0 %675
        %679 = vset.pattern.permute.xlu0 0
        %680 = vperm.xlu0 %679, %v452
        %v681 = vpop.permute.xlu0 %680
        %684 = vset.pattern.permute.xlu0 0
        %685 = vperm.xlu0 %684, %v453
        %v686 = vpop.permute.xlu0 %685
        %689 = vset.pattern.permute.xlu0 0
        %690 = vperm.xlu0 %689, %v454
        %v691 = vpop.permute.xlu0 %690
        %694 = vset.pattern.permute.xlu0 0
        %695 = vperm.xlu0 %694, %v455
        %v696 = vpop.permute.xlu0 %695
        %699 = vset.pattern.permute.xlu0 0
        %700 = vperm.xlu0 %699, %v456
        %v701 = vpop.permute.xlu0 %700
        %704 = vset.pattern.permute.xlu0 0
        %705 = vperm.xlu0 %704, %v457
        %v706 = vpop.permute.xlu0 %705
        %v708 = vmul.f32 %v358, %v461
        %v709 = vmul.f32 %v359, %v466
        %v710 = vmul.f32 %v360, %v471
        %v711 = vmul.f32 %v361, %v476
        %v712 = vmul.f32 %v362, %v481
        %v713 = vmul.f32 %v363, %v486
        %v714 = vmul.f32 %v364, %v491
        %v715 = vmul.f32 %v365, %v496
        %v716 = vmul.f32 %v366, %v501
        %v717 = vmul.f32 %v367, %v506
        %v718 = vmul.f32 %v368, %v511
        %v719 = vmul.f32 %v369, %v516
        %v720 = vmul.f32 %v370, %v521
        %v721 = vmul.f32 %v371, %v526
        %v722 = vmul.f32 %v372, %v531
        %v723 = vmul.f32 %v373, %v536
        %v724 = vmul.f32 %v374, %v541
        %v725 = vmul.f32 %v375, %v546
        %v726 = vmul.f32 %v376, %v551
        %v727 = vmul.f32 %v377, %v556
        %v728 = vmul.f32 %v378, %v561
        %v729 = vmul.f32 %v379, %v566
        %v730 = vmul.f32 %v380, %v571
        %v731 = vmul.f32 %v381, %v576
        %v732 = vmul.f32 %v382, %v581
        %v733 = vmul.f32 %v383, %v586
        %v734 = vmul.f32 %v384, %v591
        %v735 = vmul.f32 %v385, %v596
        %v736 = vmul.f32 %v386, %v601
        %v737 = vmul.f32 %v387, %v606
        %v738 = vmul.f32 %v388, %v611
        %v739 = vmul.f32 %v389, %v616
        %v740 = vmul.f32 %v390, %v621
        %v741 = vmul.f32 %v391, %v626
        %v742 = vmul.f32 %v392, %v631
        %v743 = vmul.f32 %v393, %v636
        %v744 = vmul.f32 %v394, %v641
        %v745 = vmul.f32 %v395, %v646
        %v746 = vmul.f32 %v396, %v651
        %v747 = vmul.f32 %v397, %v656
        %v748 = vmul.f32 %v398, %v661
        %v749 = vmul.f32 %v399, %v666
        %v750 = vmul.f32 %v400, %v671
        %v751 = vmul.f32 %v401, %v676
        %v752 = vmul.f32 %v402, %v681
        %v753 = vmul.f32 %v403, %v686
        %v754 = vmul.f32 %v404, %v691
        %v755 = vmul.f32 %v405, %v696
        %v756 = vmul.f32 %v406, %v701
        %v757 = vmul.f32 %v407, %v706
        %v758 = vld [vmem:[#allocation2] sm:$0xff]
        %v759 = vld [vmem:[#allocation2 + $0x8] sm:$0xff]
        %v760 = vld [vmem:[#allocation2 + $0x10] sm:$0xff]
        %v761 = vld [vmem:[#allocation2 + $0x18] sm:$0xff]
        %v762 = vld [vmem:[#allocation2 + $0x20] sm:$0xff]
        %v763 = vld [vmem:[#allocation2 + $0x28] sm:$0xff]
        %v764 = vld [vmem:[#allocation2 + $0x30] sm:$0xff]
        %v765 = vld [vmem:[#allocation2 + $0x38] sm:$0xff]
        %v766 = vpack.c.bf16 %v309, %v308
        %v767 = vpack.c.bf16 %v311, %v310
        %v768 = vpack.c.bf16 %v313, %v312
        %v769 = vpack.c.bf16 %v315, %v314
        %v770 = vpack.c.bf16 %v317, %v316
        %v771 = vpack.c.bf16 %v319, %v318
        %v772 = vpack.c.bf16 %v321, %v320
        %v773 = vpack.c.bf16 %v323, %v322
        %v774 = vpack.c.bf16 %v325, %v324
        %v775 = vpack.c.bf16 %v327, %v326
        %v776 = vpack.c.bf16 %v329, %v328
        %v777 = vpack.c.bf16 %v331, %v330
        %v778 = vpack.c.bf16 %v333, %v332
        %v779 = vpack.c.bf16 %v335, %v334
        %v780 = vpack.c.bf16 %v337, %v336
        %v781 = vpack.c.bf16 %v339, %v338
        %v782 = vpack.c.bf16 %v341, %v340
        %v783 = vpack.c.bf16 %v343, %v342
        %v784 = vpack.c.bf16 %v345, %v344
        %v785 = vpack.c.bf16 %v347, %v346
        %v786 = vpack.c.bf16 %v349, %v348
        %v787 = vpack.c.bf16 %v351, %v350
        %v788 = vpack.c.bf16 %v353, %v352
        %v789 = vpack.c.bf16 %v355, %v354
        %v790 = vpack.c.bf16 %v357, %v356
        %v791 = vpack.c.bf16 %v709, %v708
        %v792 = vpack.c.bf16 %v711, %v710
        %v793 = vpack.c.bf16 %v713, %v712
        %v794 = vpack.c.bf16 %v715, %v714
        %v795 = vpack.c.bf16 %v717, %v716
        %v796 = vpack.c.bf16 %v719, %v718
        %v797 = vpack.c.bf16 %v721, %v720
        %v798 = vpack.c.bf16 %v723, %v722
        %v799 = vpack.c.bf16 %v725, %v724
        %v800 = vpack.c.bf16 %v727, %v726
        %v801 = vpack.c.bf16 %v729, %v728
        %v802 = vpack.c.bf16 %v731, %v730
        %v803 = vpack.c.bf16 %v733, %v732
        %v804 = vpack.c.bf16 %v735, %v734
        %v805 = vpack.c.bf16 %v737, %v736
        %v806 = vpack.c.bf16 %v739, %v738
        %v807 = vpack.c.bf16 %v741, %v740
        %v808 = vpack.c.bf16 %v743, %v742
        %v809 = vpack.c.bf16 %v745, %v744
        %v810 = vpack.c.bf16 %v747, %v746
        %v811 = vpack.c.bf16 %v749, %v748
        %v812 = vpack.c.bf16 %v751, %v750
        %v813 = vpack.c.bf16 %v753, %v752
        %v814 = vpack.c.bf16 %v755, %v754
        %v815 = vpack.c.bf16 %v757, %v756
        %816 = vxpose.xlu0.c.b16.start [1/8] %v766, 128
        %817 = vxpose.xlu0.c.b16.cont [2/8] %v767, 128
        %818 = vxpose.xlu0.c.b16.cont [3/8] %v768, 128
        %819 = vxpose.xlu0.c.b16.cont [4/8] %v769, 128
        %820 = vxpose.xlu0.c.b16.cont [5/8] %v770, 128
        %821 = vxpose.xlu0.c.b16.cont [6/8] %v771, 128
        %822 = vxpose.xlu0.c.b16.cont [7/8] %v772, 128
        %823 = vxpose.xlu0.c.b16.end [8/8] %v773, 128
        %v824 = vpop.trf.xlu0
        %v825 = vpop.trf.xlu0
        %v826 = vpop.trf.xlu0
        %v827 = vpop.trf.xlu0
        %v828 = vpop.trf.xlu0
        %v829 = vpop.trf.xlu0
        %v830 = vpop.trf.xlu0
        %v831 = vpop.trf.xlu0
        %832 = vxpose.xlu0.c.b16.start [1/8] %v774, 128
        %833 = vxpose.xlu0.c.b16.cont [2/8] %v775, 128
        %834 = vxpose.xlu0.c.b16.cont [3/8] %v776, 128
        %835 = vxpose.xlu0.c.b16.cont [4/8] %v777, 128
        %836 = vxpose.xlu0.c.b16.cont [5/8] %v778, 128
        %837 = vxpose.xlu0.c.b16.cont [6/8] %v779, 128
        %838 = vxpose.xlu0.c.b16.cont [7/8] %v780, 128
        %839 = vxpose.xlu0.c.b16.end [8/8] %v781, 128
        %v840 = vpop.trf.xlu0
        %v841 = vpop.trf.xlu0
        %v842 = vpop.trf.xlu0
        %v843 = vpop.trf.xlu0
        %v844 = vpop.trf.xlu0
        %v845 = vpop.trf.xlu0
        %v846 = vpop.trf.xlu0
        %v847 = vpop.trf.xlu0
        %848 = vxpose.xlu0.c.b16.start [1/8] %v782, 128
        %849 = vxpose.xlu0.c.b16.cont [2/8] %v783, 128
        %850 = vxpose.xlu0.c.b16.cont [3/8] %v784, 128
        %851 = vxpose.xlu0.c.b16.cont [4/8] %v785, 128
        %852 = vxpose.xlu0.c.b16.cont [5/8] %v786, 128
        %853 = vxpose.xlu0.c.b16.cont [6/8] %v787, 128
        %854 = vxpose.xlu0.c.b16.cont [7/8] %v788, 128
        %855 = vxpose.xlu0.c.b16.end [8/8] %v789, 128
        %v856 = vpop.trf.xlu0
        %v857 = vpop.trf.xlu0
        %v858 = vpop.trf.xlu0
        %v859 = vpop.trf.xlu0
        %v860 = vpop.trf.xlu0
        %v861 = vpop.trf.xlu0
        %v862 = vpop.trf.xlu0
        %v863 = vpop.trf.xlu0
        %864 = vxpose.xlu0.c.b16.start [1/8] %v790, 128
        %865 = vxpose.xlu0.c.b16.cont [2/8] 0, 128
        %866 = vxpose.xlu0.c.b16.cont [3/8] 0, 128
        %867 = vxpose.xlu0.c.b16.cont [4/8] 0, 128
        %868 = vxpose.xlu0.c.b16.cont [5/8] 0, 128
        %869 = vxpose.xlu0.c.b16.cont [6/8] 0, 128
        %870 = vxpose.xlu0.c.b16.cont [7/8] 0, 128
        %871 = vxpose.xlu0.c.b16.end [8/8] 0, 128
        %v872 = vpop.trf.xlu0
        %v873 = vpop.trf.xlu0
        %v874 = vpop.trf.xlu0
        %v875 = vpop.trf.xlu0
        %v876 = vpop.trf.xlu0
        %v877 = vpop.trf.xlu0
        %v878 = vpop.trf.xlu0
        %v879 = vpop.trf.xlu0
        %vm880 = vcmask 130048
        %v882 = vsel %vm880, %v872, 0
        %v885 = vsel %vm880, %v873, 0
        %v888 = vsel %vm880, %v874, 0
        %v891 = vsel %vm880, %v875, 0
        %893 = vmatprep.subr.bf16.mxu0 0
        %894 = vmatpush1.bf16.msra.mxu0 %v798
        %895 = vmatprep.subr.bf16.mxu0 0
        %896 = vmatpush1.bf16.msra.mxu0 %v797
        %897 = vmatprep.subr.bf16.mxu0 0
        %898 = vmatpush1.bf16.msra.mxu0 %v796
        %899 = vmatprep.subr.bf16.mxu0 0
        %900 = vmatpush1.bf16.msra.mxu0 %v795
        %901 = vmatprep.subr.bf16.mxu0 0
        %902 = vmatpush1.bf16.msra.mxu0 %v794
        %903 = vmatprep.subr.bf16.mxu0 0
        %904 = vmatpush1.bf16.msra.mxu0 %v793
        %905 = vmatprep.subr.bf16.mxu0 0
        %906 = vmatpush1.bf16.msra.mxu0 %v792
        %907 = vmatprep.subr.bf16.mxu0 0
        %908 = vmatpush1.bf16.msra.mxu0 %v791
        %909 = vmatprep.subr.bf16.mxu0 0
        %910 = vmatpush2.bf16.msra.mxu0 %v806
        %911 = vmatprep.subr.bf16.mxu0 0
        %912 = vmatpush2.bf16.msra.mxu0 %v805
        %913 = vmatprep.subr.bf16.mxu0 0
        %914 = vmatpush2.bf16.msra.mxu0 %v804
        %915 = vmatprep.subr.bf16.mxu0 0
        %916 = vmatpush2.bf16.msra.mxu0 %v803
        %917 = vmatprep.subr.bf16.mxu0 0
        %918 = vmatpush2.bf16.msra.mxu0 %v802
        %919 = vmatprep.subr.bf16.mxu0 0
        %920 = vmatpush2.bf16.msra.mxu0 %v801
        %921 = vmatprep.subr.bf16.mxu0 0
        %922 = vmatpush2.bf16.msra.mxu0 %v800
        %923 = vmatprep.subr.bf16.mxu0 0
        %924 = vmatpush2.bf16.msra.mxu0 %v799
        %925 = vmatprep.mubr.bf16.mxu0 %v840
        %926 = vmatmul.mubr.bf16.gmra.mxu0 %v824
        %v927 = vpop.f32.mrf.mxu0
        %v928 = vadd.f32 0.0, %v927
        %v929 = vpop.f32.mrf.mxu0
        %v930 = vpop.f32.mrf.mxu0
        %v931 = vadd.f32 0.0, %v930
        %v932 = vpop.f32.mrf.mxu0
        %933 = vmatprep.mubr.bf16.mxu0 %v841
        %934 = vmatmul.mubr.bf16.gmra.mxu0 %v825
        %v935 = vpop.f32.mrf.mxu0
        %v936 = vadd.f32 0.0, %v935
        %v937 = vpop.f32.mrf.mxu0
        %v938 = vpop.f32.mrf.mxu0
        %v939 = vadd.f32 0.0, %v938
        %v940 = vpop.f32.mrf.mxu0
        %941 = vmatprep.mubr.bf16.mxu0 %v842
        %942 = vmatmul.mubr.bf16.gmra.mxu0 %v826
        %v943 = vpop.f32.mrf.mxu0
        %v944 = vadd.f32 0.0, %v943
        %v945 = vpop.f32.mrf.mxu0
        %v946 = vpop.f32.mrf.mxu0
        %v947 = vadd.f32 0.0, %v946
        %v948 = vpop.f32.mrf.mxu0
        %949 = vmatprep.mubr.bf16.mxu0 %v843
        %950 = vmatmul.mubr.bf16.gmra.mxu0 %v827
        %v951 = vpop.f32.mrf.mxu0
        %v952 = vadd.f32 0.0, %v951
        %v953 = vpop.f32.mrf.mxu0
        %v954 = vpop.f32.mrf.mxu0
        %v955 = vadd.f32 0.0, %v954
        %v956 = vpop.f32.mrf.mxu0
        %957 = vdwg.mxu0
        %958 = vmatprep.subr.bf16.mxu0 0
        %959 = vmatpush1.bf16.msra.mxu0 %v814
        %960 = vmatprep.subr.bf16.mxu0 0
        %961 = vmatpush1.bf16.msra.mxu0 %v813
        %962 = vmatprep.subr.bf16.mxu0 0
        %963 = vmatpush1.bf16.msra.mxu0 %v812
        %964 = vmatprep.subr.bf16.mxu0 0
        %965 = vmatpush1.bf16.msra.mxu0 %v811
        %966 = vmatprep.subr.bf16.mxu0 0
        %967 = vmatpush1.bf16.msra.mxu0 %v810
        %968 = vmatprep.subr.bf16.mxu0 0
        %969 = vmatpush1.bf16.msra.mxu0 %v809
        %970 = vmatprep.subr.bf16.mxu0 0
        %971 = vmatpush1.bf16.msra.mxu0 %v808
        %972 = vmatprep.subr.bf16.mxu0 0
        %973 = vmatpush1.bf16.msra.mxu0 %v807
        %974 = vmatprep.subr.bf16.mxu0 0
        %975 = vmatpush2.bf16.msra.mxu0 0
        %976 = vmatprep.subr.bf16.mxu0 0
        %977 = vmatpush2.bf16.msra.mxu0 0
        %978 = vmatprep.subr.bf16.mxu0 0
        %979 = vmatpush2.bf16.msra.mxu0 0
        %980 = vmatprep.subr.bf16.mxu0 0
        %981 = vmatpush2.bf16.msra.mxu0 0
        %982 = vmatprep.subr.bf16.mxu0 0
        %983 = vmatpush2.bf16.msra.mxu0 0
        %984 = vmatprep.subr.bf16.mxu0 0
        %985 = vmatpush2.bf16.msra.mxu0 0
        %986 = vmatprep.subr.bf16.mxu0 0
        %987 = vmatpush2.bf16.msra.mxu0 0
        %988 = vmatprep.subr.bf16.mxu0 0
        %989 = vmatpush2.bf16.msra.mxu0 %v815
        %990 = vmatprep.mubr.bf16.mxu0 %v882
        %991 = vmatmul.mubr.bf16.gmra.mxu0 %v856
        %v992 = vpop.f32.mrf.mxu0
        %v993 = vadd.f32 %v928, %v992
        %v994 = vpop.f32.mrf.mxu0
        %v995 = vpop.f32.mrf.mxu0
        %v996 = vadd.f32 %v931, %v995
        %v997 = vpop.f32.mrf.mxu0
        %998 = vmatprep.mubr.bf16.mxu0 %v885
        %999 = vmatmul.mubr.bf16.gmra.mxu0 %v857
        %v1000 = vpop.f32.mrf.mxu0
        %v1001 = vadd.f32 %v936, %v1000
        %v1002 = vpop.f32.mrf.mxu0
        %v1003 = vpop.f32.mrf.mxu0
        %v1004 = vadd.f32 %v939, %v1003
        %v1005 = vpop.f32.mrf.mxu0
        %1006 = vmatprep.mubr.bf16.mxu0 %v888
        %1007 = vmatmul.mubr.bf16.gmra.mxu0 %v858
        %v1008 = vpop.f32.mrf.mxu0
        %v1009 = vadd.f32 %v944, %v1008
        %v1010 = vpop.f32.mrf.mxu0
        %v1011 = vpop.f32.mrf.mxu0
        %v1012 = vadd.f32 %v947, %v1011
        %v1013 = vpop.f32.mrf.mxu0
        %1014 = vmatprep.mubr.bf16.mxu0 %v891
        %1015 = vmatmul.mubr.bf16.gmra.mxu0 %v859
        %v1016 = vpop.f32.mrf.mxu0
        %v1017 = vadd.f32 %v952, %v1016
        %v1018 = vpop.f32.mrf.mxu0
        %v1019 = vpop.f32.mrf.mxu0
        %v1020 = vadd.f32 %v955, %v1019
        %v1021 = vpop.f32.mrf.mxu0
        %1022 = vdwg.mxu0
        %v1023 = vadd.f32 %v758, %v993
        %v1024 = vadd.f32 %v759, %v996
        %v1025 = vadd.f32 %v760, %v1001
        %v1026 = vadd.f32 %v761, %v1004
        %v1027 = vadd.f32 %v762, %v1009
        %v1028 = vadd.f32 %v763, %v1012
        %v1029 = vadd.f32 %v764, %v1017
        %v1030 = vadd.f32 %v765, %v1020
        %1031 = vst.msk [vmem:[#allocation2] sm:$0xff] %vm880, %v1023
        %1032 = vst.msk [vmem:[#allocation2 + $0x8] sm:$0xff] %vm880, %v1024
        %1033 = vst.msk [vmem:[#allocation2 + $0x10] sm:$0xff] %vm880, %v1025
        %1034 = vst.msk [vmem:[#allocation2 + $0x18] sm:$0xff] %vm880, %v1026
        %1035 = vst.msk [vmem:[#allocation2 + $0x20] sm:$0xff] %vm880, %v1027
        %1036 = vst.msk [vmem:[#allocation2 + $0x28] sm:$0xff] %vm880, %v1028
        %1037 = vst.msk [vmem:[#allocation2 + $0x30] sm:$0xff] %vm880, %v1029
        %1038 = vst.msk [vmem:[#allocation2 + $0x38] sm:$0xff] %vm880, %v1030
        // Predicated region
        $region45: #{tpu_custom_call.1} parent=39 // pred_check
          %p1039 = pneg %p295
        $region46: #{tpu_custom_call.1} parent=39 // pred_check_branch
          %1041 = sbr.rel (%p1039) target = $region48
        $region47: #{tpu_custom_call.1} parent=39 // pred_region
          %v1042 = vld [vmem:[%s3] sm:$0xff]
          %v1043 = vld [vmem:[%s3 + $0x8] sm:$0xff]
          %v1044 = vld [vmem:[%s3 + $0x10] sm:$0xff]
          %v1045 = vld [vmem:[%s3 + $0x18] sm:$0xff]
          %v1046 = vld [vmem:[%s3 + $0x20] sm:$0xff]
          %v1047 = vld [vmem:[%s3 + $0x28] sm:$0xff]
          %v1048 = vld [vmem:[%s3 + $0x30] sm:$0xff]
          %v1049 = vld [vmem:[%s3 + $0x38] sm:$0xff]
          %v1050 = vld [vmem:[#allocation2] sm:$0xff]
          %v1051 = vld [vmem:[#allocation2 + $0x8] sm:$0xff]
          %v1052 = vld [vmem:[#allocation2 + $0x10] sm:$0xff]
          %v1053 = vld [vmem:[#allocation2 + $0x18] sm:$0xff]
          %v1054 = vld [vmem:[#allocation2 + $0x20] sm:$0xff]
          %v1055 = vld [vmem:[#allocation2 + $0x28] sm:$0xff]
          %v1056 = vld [vmem:[#allocation2 + $0x30] sm:$0xff]
          %v1057 = vld [vmem:[#allocation2 + $0x38] sm:$0xff]
          %v1058 = vmul.f32 %v1042, %v1050
          %v1059 = vmul.f32 %v1043, %v1051
          %v1060 = vmul.f32 %v1044, %v1052
          %v1061 = vmul.f32 %v1045, %v1053
          %v1062 = vmul.f32 %v1046, %v1054
          %v1063 = vmul.f32 %v1047, %v1055
          %v1064 = vmul.f32 %v1048, %v1056
          %v1065 = vmul.f32 %v1049, %v1057
          %1066 = vst.msk [vmem:[#allocation2] sm:$0xff] %vm880, %v1058
          %1067 = vst.msk [vmem:[#allocation2 + $0x8] sm:$0xff] %vm880, %v1059
          %1068 = vst.msk [vmem:[#allocation2 + $0x10] sm:$0xff] %vm880, %v1060
          %1069 = vst.msk [vmem:[#allocation2 + $0x18] sm:$0xff] %vm880, %v1061
          %1070 = vst.msk [vmem:[#allocation2 + $0x20] sm:$0xff] %vm880, %v1062
          %1071 = vst.msk [vmem:[#allocation2 + $0x28] sm:$0xff] %vm880, %v1063
          %1072 = vst.msk [vmem:[#allocation2 + $0x30] sm:$0xff] %vm880, %v1064
          %1073 = vst.msk [vmem:[#allocation2 + $0x38] sm:$0xff] %vm880, %v1065
        $region48: #{tpu_custom_call.1} parent=39 // pred_fallthru
          _
      $region40: #{tpu_custom_call.1} parent=35 // pred_fallthru
        _
      %p1074 = scmp.eq.s32.totalorder %s19, 1
      // Predicated region
      $region49: #{tpu_custom_call.1} parent=35 // pred_check
        %p1075 = pneg %p1074
      $region50: #{tpu_custom_call.1} parent=35 // pred_check_branch
        %1077 = sbr.rel (%p1075) target = $region52
      $region51: #{tpu_custom_call.1} parent=35 // pred_region
        %v1078 = vld [vmem:[%s280] sm:$0xff]
        %v1079 = vld [vmem:[%s280 + $0x8] sm:$0xff]
        %v1080 = vld [vmem:[%s280 + $0x10] sm:$0xff]
        %v1081 = vld [vmem:[%s280 + $0x18] sm:$0xff]
        %v1082 = vld [vmem:[%s280 + $0x20] sm:$0xff]
        %v1083 = vld [vmem:[%s280 + $0x28] sm:$0xff]
        %v1084 = vld [vmem:[%s280 + $0x30] sm:$0xff]
        %v1085 = vld [vmem:[%s280 + $0x38] sm:$0xff]
        %v1086 = vld [vmem:[%s280 + $0x40] sm:$0xff]
        %v1087 = vld [vmem:[%s280 + $0x48] sm:$0xff]
        %v1088 = vld [vmem:[%s280 + $0x50] sm:$0xff]
        %v1089 = vld [vmem:[%s280 + $0x58] sm:$0xff]
        %v1090 = vld [vmem:[%s280 + $0x60] sm:$0xff]
        %v1091 = vld [vmem:[%s280 + $0x68] sm:$0xff]
        %v1092 = vld [vmem:[%s280 + $0x70] sm:$0xff]
        %v1093 = vld [vmem:[%s280 + $0x78] sm:$0xff]
        %v1094 = vld [vmem:[%s280 + $0x80] sm:$0xff]
        %v1095 = vld [vmem:[%s280 + $0x88] sm:$0xff]
        %v1096 = vld [vmem:[%s280 + $0x90] sm:$0xff]
        %v1097 = vld [vmem:[%s280 + $0x98] sm:$0xff]
        %v1098 = vld [vmem:[%s280 + $0xa0] sm:$0xff]
        %v1099 = vld [vmem:[%s280 + $0xa8] sm:$0xff]
        %v1100 = vld [vmem:[%s280 + $0xb0] sm:$0xff]
        %v1101 = vld [vmem:[%s280 + $0xb8] sm:$0xff]
        %v1102 = vld [vmem:[%s280 + $0xc0] sm:$0xff]
        %v1103 = vld [vmem:[%s280 + $0xc8] sm:$0xff]
        %v1104 = vld [vmem:[%s280 + $0xd0] sm:$0xff]
        %v1105 = vld [vmem:[%s280 + $0xd8] sm:$0xff]
        %v1106 = vld [vmem:[%s280 + $0xe0] sm:$0xff]
        %v1107 = vld [vmem:[%s280 + $0xe8] sm:$0xff]
        %v1108 = vld [vmem:[%s280 + $0xf0] sm:$0xff]
        %v1109 = vld [vmem:[%s280 + $0xf8] sm:$0xff]
        %v1110 = vld [vmem:[%s280 + $0x100] sm:$0xff]
        %v1111 = vld [vmem:[%s280 + $0x108] sm:$0xff]
        %v1112 = vld [vmem:[%s280 + $0x110] sm:$0xff]
        %v1113 = vld [vmem:[%s280 + $0x118] sm:$0xff]
        %v1114 = vld [vmem:[%s280 + $0x120] sm:$0xff]
        %v1115 = vld [vmem:[%s280 + $0x128] sm:$0xff]
        %v1116 = vld [vmem:[%s280 + $0x130] sm:$0xff]
        %v1117 = vld [vmem:[%s280 + $0x138] sm:$0xff]
        %v1118 = vld [vmem:[%s280 + $0x140] sm:$0xff]
        %v1119 = vld [vmem:[%s280 + $0x148] sm:$0xff]
        %v1120 = vld [vmem:[%s280 + $0x150] sm:$0xff]
        %v1121 = vld [vmem:[%s280 + $0x158] sm:$0xff]
        %v1122 = vld [vmem:[%s280 + $0x160] sm:$0xff]
        %v1123 = vld [vmem:[%s280 + $0x168] sm:$0xff]
        %v1124 = vld [vmem:[%s280 + $0x170] sm:$0xff]
        %v1125 = vld [vmem:[%s280 + $0x178] sm:$0xff]
        %v1126 = vld [vmem:[%s280 + $0x180] sm:$0xff]
        %v1127 = vld [vmem:[%s280 + $0x188] sm:$0xff]
        %v1128 = vpack.c.bf16 %v1079, %v1078
        %v1129 = vpack.c.bf16 %v1081, %v1080
        %v1130 = vpack.c.bf16 %v1083, %v1082
        %v1131 = vpack.c.bf16 %v1085, %v1084
        %v1132 = vpack.c.bf16 %v1087, %v1086
        %v1133 = vpack.c.bf16 %v1089, %v1088
        %v1134 = vpack.c.bf16 %v1091, %v1090
        %v1135 = vpack.c.bf16 %v1093, %v1092
        %v1136 = vpack.c.bf16 %v1095, %v1094
        %v1137 = vpack.c.bf16 %v1097, %v1096
        %v1138 = vpack.c.bf16 %v1099, %v1098
        %v1139 = vpack.c.bf16 %v1101, %v1100
        %v1140 = vpack.c.bf16 %v1103, %v1102
        %v1141 = vpack.c.bf16 %v1105, %v1104
        %v1142 = vpack.c.bf16 %v1107, %v1106
        %v1143 = vpack.c.bf16 %v1109, %v1108
        %v1144 = vpack.c.bf16 %v1111, %v1110
        %v1145 = vpack.c.bf16 %v1113, %v1112
        %v1146 = vpack.c.bf16 %v1115, %v1114
        %v1147 = vpack.c.bf16 %v1117, %v1116
        %v1148 = vpack.c.bf16 %v1119, %v1118
        %v1149 = vpack.c.bf16 %v1121, %v1120
        %v1150 = vpack.c.bf16 %v1123, %v1122
        %v1151 = vpack.c.bf16 %v1125, %v1124
        %v1152 = vpack.c.bf16 %v1127, %v1126
        %v1153 = vld [vmem:[#allocation2] sm:$0xff]
        %v1154 = vld [vmem:[#allocation2 + $0x8] sm:$0xff]
        %v1155 = vld [vmem:[#allocation2 + $0x10] sm:$0xff]
        %v1156 = vld [vmem:[#allocation2 + $0x18] sm:$0xff]
        %v1157 = vld [vmem:[#allocation2 + $0x20] sm:$0xff]
        %v1158 = vld [vmem:[#allocation2 + $0x28] sm:$0xff]
        %v1159 = vld [vmem:[#allocation2 + $0x30] sm:$0xff]
        %v1160 = vld [vmem:[#allocation2 + $0x38] sm:$0xff]
        %v1161 = vpack.c.bf16 %v1154, %v1153
        %v1162 = vpack.c.bf16 %v1156, %v1155
        %v1163 = vpack.c.bf16 %v1158, %v1157
        %v1164 = vpack.c.bf16 %v1160, %v1159
        %vm1165 = vcmask 523264
        %v1167 = vsel %vm1165, %v1128, 0
        %v1170 = vsel %vm1165, %v1129, 0
        %v1173 = vsel %vm1165, %v1130, 0
        %v1176 = vsel %vm1165, %v1131, 0
        %v1179 = vsel %vm1165, %v1132, 0
        %v1182 = vsel %vm1165, %v1133, 0
        %v1185 = vsel %vm1165, %v1134, 0
        %v1188 = vsel %vm1165, %v1135, 0
        %v1191 = vsel %vm1165, %v1136, 0
        %v1194 = vsel %vm1165, %v1137, 0
        %v1197 = vsel %vm1165, %v1138, 0
        %v1200 = vsel %vm1165, %v1139, 0
        %v1203 = vsel %vm1165, %v1140, 0
        %v1206 = vsel %vm1165, %v1141, 0
        %v1209 = vsel %vm1165, %v1142, 0
        %v1212 = vsel %vm1165, %v1143, 0
        %v1215 = vsel %vm1165, %v1144, 0
        %v1218 = vsel %vm1165, %v1145, 0
        %v1221 = vsel %vm1165, %v1146, 0
        %v1224 = vsel %vm1165, %v1147, 0
        %v1227 = vsel %vm1165, %v1148, 0
        %v1230 = vsel %vm1165, %v1149, 0
        %v1233 = vsel %vm1165, %v1150, 0
        %v1236 = vsel %vm1165, %v1151, 0
        %v1239 = vsel %vm1165, %v1152, 0
        %1241 = vmatprep.subr.bf16.mxu0 0
        %1242 = vmatpush1.bf16.msra.mxu0 0
        %1243 = vmatprep.subr.bf16.mxu0 0
        %1244 = vmatpush1.bf16.msra.mxu0 0
        %1245 = vmatprep.subr.bf16.mxu0 0
        %1246 = vmatpush1.bf16.msra.mxu0 0
        %1247 = vmatprep.subr.bf16.mxu0 0
        %1248 = vmatpush1.bf16.msra.mxu0 0
        %1249 = vmatprep.subr.bf16.mxu0 0
        %1250 = vmatpush1.bf16.msra.mxu0 %v1164
        %1251 = vmatprep.subr.bf16.mxu0 0
        %1252 = vmatpush1.bf16.msra.mxu0 %v1163
        %1253 = vmatprep.subr.bf16.mxu0 0
        %1254 = vmatpush1.bf16.msra.mxu0 %v1162
        %1255 = vmatprep.subr.bf16.mxu0 0
        %1256 = vmatpush1.bf16.msra.mxu0 %v1161
        %1257 = vmatprep.subr.bf16.mxu0 0
        %1258 = vmatpush2.bf16.msra.mxu0 0
        %1259 = vmatprep.subr.bf16.mxu0 0
        %1260 = vmatpush2.bf16.msra.mxu0 0
        %1261 = vmatprep.subr.bf16.mxu0 0
        %1262 = vmatpush2.bf16.msra.mxu0 0
        %1263 = vmatprep.subr.bf16.mxu0 0
        %1264 = vmatpush2.bf16.msra.mxu0 0
        %1265 = vmatprep.subr.bf16.mxu0 0
        %1266 = vmatpush2.bf16.msra.mxu0 0
        %1267 = vmatprep.subr.bf16.mxu0 0
        %1268 = vmatpush2.bf16.msra.mxu0 0
        %1269 = vmatprep.subr.bf16.mxu0 0
        %1270 = vmatpush2.bf16.msra.mxu0 0
        %1271 = vmatprep.subr.bf16.mxu0 0
        %1272 = vmatpush2.bf16.msra.mxu0 0
        %1273 = vmatprep.mubr.bf16.mxu0 0
        %1274 = vmatmul.mubr.bf16.gmra.mxu0 %v1167
        %v1275 = vpop.f32.mrf.mxu0
        %v1276 = vadd.f32 0.0, %v1275
        %v1277 = vpop.f32.mrf.mxu0
        %v1278 = vpop.f32.mrf.mxu0
        %v1279 = vadd.f32 0.0, %v1278
        %v1280 = vpop.f32.mrf.mxu0
        %1281 = vmatprep.mubr.bf16.mxu0 0
        %1282 = vmatmul.mubr.bf16.gmra.mxu0 %v1170
        %v1283 = vpop.f32.mrf.mxu0
        %v1284 = vadd.f32 0.0, %v1283
        %v1285 = vpop.f32.mrf.mxu0
        %v1286 = vpop.f32.mrf.mxu0
        %v1287 = vadd.f32 0.0, %v1286
        %v1288 = vpop.f32.mrf.mxu0
        %1289 = vmatprep.mubr.bf16.mxu0 0
        %1290 = vmatmul.mubr.bf16.gmra.mxu0 %v1173
        %v1291 = vpop.f32.mrf.mxu0
        %v1292 = vadd.f32 0.0, %v1291
        %v1293 = vpop.f32.mrf.mxu0
        %v1294 = vpop.f32.mrf.mxu0
        %v1295 = vadd.f32 0.0, %v1294
        %v1296 = vpop.f32.mrf.mxu0
        %1297 = vmatprep.mubr.bf16.mxu0 0
        %1298 = vmatmul.mubr.bf16.gmra.mxu0 %v1176
        %v1299 = vpop.f32.mrf.mxu0
        %v1300 = vadd.f32 0.0, %v1299
        %v1301 = vpop.f32.mrf.mxu0
        %v1302 = vpop.f32.mrf.mxu0
        %v1303 = vadd.f32 0.0, %v1302
        %v1304 = vpop.f32.mrf.mxu0
        %1305 = vmatprep.mubr.bf16.mxu0 0
        %1306 = vmatmul.mubr.bf16.gmra.mxu0 %v1179
        %v1307 = vpop.f32.mrf.mxu0
        %v1308 = vadd.f32 0.0, %v1307
        %v1309 = vpop.f32.mrf.mxu0
        %v1310 = vpop.f32.mrf.mxu0
        %v1311 = vadd.f32 0.0, %v1310
        %v1312 = vpop.f32.mrf.mxu0
        %1313 = vmatprep.mubr.bf16.mxu0 0
        %1314 = vmatmul.mubr.bf16.gmra.mxu0 %v1182
        %v1315 = vpop.f32.mrf.mxu0
        %v1316 = vadd.f32 0.0, %v1315
        %v1317 = vpop.f32.mrf.mxu0
        %v1318 = vpop.f32.mrf.mxu0
        %v1319 = vadd.f32 0.0, %v1318
        %v1320 = vpop.f32.mrf.mxu0
        %1321 = vmatprep.mubr.bf16.mxu0 0
        %1322 = vmatmul.mubr.bf16.gmra.mxu0 %v1185
        %v1323 = vpop.f32.mrf.mxu0
        %v1324 = vadd.f32 0.0, %v1323
        %v1325 = vpop.f32.mrf.mxu0
        %v1326 = vpop.f32.mrf.mxu0
        %v1327 = vadd.f32 0.0, %v1326
        %v1328 = vpop.f32.mrf.mxu0
        %1329 = vmatprep.mubr.bf16.mxu0 0
        %1330 = vmatmul.mubr.bf16.gmra.mxu0 %v1188
        %v1331 = vpop.f32.mrf.mxu0
        %v1332 = vadd.f32 0.0, %v1331
        %v1333 = vpop.f32.mrf.mxu0
        %v1334 = vpop.f32.mrf.mxu0
        %v1335 = vadd.f32 0.0, %v1334
        %v1336 = vpop.f32.mrf.mxu0
        %1337 = vmatprep.mubr.bf16.mxu0 0
        %1338 = vmatmul.mubr.bf16.gmra.mxu0 %v1191
        %v1339 = vpop.f32.mrf.mxu0
        %v1340 = vadd.f32 0.0, %v1339
        %v1341 = vpop.f32.mrf.mxu0
        %v1342 = vpop.f32.mrf.mxu0
        %v1343 = vadd.f32 0.0, %v1342
        %v1344 = vpop.f32.mrf.mxu0
        %1345 = vmatprep.mubr.bf16.mxu0 0
        %1346 = vmatmul.mubr.bf16.gmra.mxu0 %v1194
        %v1347 = vpop.f32.mrf.mxu0
        %v1348 = vadd.f32 0.0, %v1347
        %v1349 = vpop.f32.mrf.mxu0
        %v1350 = vpop.f32.mrf.mxu0
        %v1351 = vadd.f32 0.0, %v1350
        %v1352 = vpop.f32.mrf.mxu0
        %1353 = vmatprep.mubr.bf16.mxu0 0
        %1354 = vmatmul.mubr.bf16.gmra.mxu0 %v1197
        %v1355 = vpop.f32.mrf.mxu0
        %v1356 = vadd.f32 0.0, %v1355
        %v1357 = vpop.f32.mrf.mxu0
        %v1358 = vpop.f32.mrf.mxu0
        %v1359 = vadd.f32 0.0, %v1358
        %v1360 = vpop.f32.mrf.mxu0
        %1361 = vmatprep.mubr.bf16.mxu0 0
        %1362 = vmatmul.mubr.bf16.gmra.mxu0 %v1200
        %v1363 = vpop.f32.mrf.mxu0
        %v1364 = vadd.f32 0.0, %v1363
        %v1365 = vpop.f32.mrf.mxu0
        %v1366 = vpop.f32.mrf.mxu0
        %v1367 = vadd.f32 0.0, %v1366
        %v1368 = vpop.f32.mrf.mxu0
        %1369 = vmatprep.mubr.bf16.mxu0 0
        %1370 = vmatmul.mubr.bf16.gmra.mxu0 %v1203
        %v1371 = vpop.f32.mrf.mxu0
        %v1372 = vadd.f32 0.0, %v1371
        %v1373 = vpop.f32.mrf.mxu0
        %v1374 = vpop.f32.mrf.mxu0
        %v1375 = vadd.f32 0.0, %v1374
        %v1376 = vpop.f32.mrf.mxu0
        %1377 = vmatprep.mubr.bf16.mxu0 0
        %1378 = vmatmul.mubr.bf16.gmra.mxu0 %v1206
        %v1379 = vpop.f32.mrf.mxu0
        %v1380 = vadd.f32 0.0, %v1379
        %v1381 = vpop.f32.mrf.mxu0
        %v1382 = vpop.f32.mrf.mxu0
        %v1383 = vadd.f32 0.0, %v1382
        %v1384 = vpop.f32.mrf.mxu0
        %1385 = vmatprep.mubr.bf16.mxu0 0
        %1386 = vmatmul.mubr.bf16.gmra.mxu0 %v1209
        %v1387 = vpop.f32.mrf.mxu0
        %v1388 = vadd.f32 0.0, %v1387
        %v1389 = vpop.f32.mrf.mxu0
        %v1390 = vpop.f32.mrf.mxu0
        %v1391 = vadd.f32 0.0, %v1390
        %v1392 = vpop.f32.mrf.mxu0
        %1393 = vmatprep.mubr.bf16.mxu0 0
        %1394 = vmatmul.mubr.bf16.gmra.mxu0 %v1212
        %v1395 = vpop.f32.mrf.mxu0
        %v1396 = vadd.f32 0.0, %v1395
        %v1397 = vpop.f32.mrf.mxu0
        %v1398 = vpop.f32.mrf.mxu0
        %v1399 = vadd.f32 0.0, %v1398
        %v1400 = vpop.f32.mrf.mxu0
        %1401 = vmatprep.mubr.bf16.mxu0 0
        %1402 = vmatmul.mubr.bf16.gmra.mxu0 %v1215
        %v1403 = vpop.f32.mrf.mxu0
        %v1404 = vadd.f32 0.0, %v1403
        %v1405 = vpop.f32.mrf.mxu0
        %v1406 = vpop.f32.mrf.mxu0
        %v1407 = vadd.f32 0.0, %v1406
        %v1408 = vpop.f32.mrf.mxu0
        %1409 = vmatprep.mubr.bf16.mxu0 0
        %1410 = vmatmul.mubr.bf16.gmra.mxu0 %v1218
        %v1411 = vpop.f32.mrf.mxu0
        %v1412 = vadd.f32 0.0, %v1411
        %v1413 = vpop.f32.mrf.mxu0
        %v1414 = vpop.f32.mrf.mxu0
        %v1415 = vadd.f32 0.0, %v1414
        %v1416 = vpop.f32.mrf.mxu0
        %1417 = vmatprep.mubr.bf16.mxu0 0
        %1418 = vmatmul.mubr.bf16.gmra.mxu0 %v1221
        %v1419 = vpop.f32.mrf.mxu0
        %v1420 = vadd.f32 0.0, %v1419
        %v1421 = vpop.f32.mrf.mxu0
        %v1422 = vpop.f32.mrf.mxu0
        %v1423 = vadd.f32 0.0, %v1422
        %v1424 = vpop.f32.mrf.mxu0
        %1425 = vmatprep.mubr.bf16.mxu0 0
        %1426 = vmatmul.mubr.bf16.gmra.mxu0 %v1224
        %v1427 = vpop.f32.mrf.mxu0
        %v1428 = vadd.f32 0.0, %v1427
        %v1429 = vpop.f32.mrf.mxu0
        %v1430 = vpop.f32.mrf.mxu0
        %v1431 = vadd.f32 0.0, %v1430
        %v1432 = vpop.f32.mrf.mxu0
        %1433 = vmatprep.mubr.bf16.mxu0 0
        %1434 = vmatmul.mubr.bf16.gmra.mxu0 %v1227
        %v1435 = vpop.f32.mrf.mxu0
        %v1436 = vadd.f32 0.0, %v1435
        %v1437 = vpop.f32.mrf.mxu0
        %v1438 = vpop.f32.mrf.mxu0
        %v1439 = vadd.f32 0.0, %v1438
        %v1440 = vpop.f32.mrf.mxu0
        %1441 = vmatprep.mubr.bf16.mxu0 0
        %1442 = vmatmul.mubr.bf16.gmra.mxu0 %v1230
        %v1443 = vpop.f32.mrf.mxu0
        %v1444 = vadd.f32 0.0, %v1443
        %v1445 = vpop.f32.mrf.mxu0
        %v1446 = vpop.f32.mrf.mxu0
        %v1447 = vadd.f32 0.0, %v1446
        %v1448 = vpop.f32.mrf.mxu0
        %1449 = vmatprep.mubr.bf16.mxu0 0
        %1450 = vmatmul.mubr.bf16.gmra.mxu0 %v1233
        %v1451 = vpop.f32.mrf.mxu0
        %v1452 = vadd.f32 0.0, %v1451
        %v1453 = vpop.f32.mrf.mxu0
        %v1454 = vpop.f32.mrf.mxu0
        %v1455 = vadd.f32 0.0, %v1454
        %v1456 = vpop.f32.mrf.mxu0
        %1457 = vmatprep.mubr.bf16.mxu0 0
        %1458 = vmatmul.mubr.bf16.gmra.mxu0 %v1236
        %v1459 = vpop.f32.mrf.mxu0
        %v1460 = vadd.f32 0.0, %v1459
        %v1461 = vpop.f32.mrf.mxu0
        %v1462 = vpop.f32.mrf.mxu0
        %v1463 = vadd.f32 0.0, %v1462
        %v1464 = vpop.f32.mrf.mxu0
        %1465 = vmatprep.mubr.bf16.mxu0 0
        %1466 = vmatmul.mubr.bf16.gmra.mxu0 %v1239
        %v1467 = vpop.f32.mrf.mxu0
        %v1468 = vadd.f32 0.0, %v1467
        %v1469 = vpop.f32.mrf.mxu0
        %v1470 = vpop.f32.mrf.mxu0
        %v1471 = vadd.f32 0.0, %v1470
        %v1472 = vpop.f32.mrf.mxu0
        %1473 = vdwg.mxu0
        %vm1474 = vcmask 130048
        %1475 = vst.msk [vmem:[%s287] sm:$0xff] %vm1474, %v1276
        %1476 = vst.msk [vmem:[%s287 + $0x8] sm:$0xff] %vm1474, %v1279
        %1477 = vst.msk [vmem:[%s287 + $0x10] sm:$0xff] %vm1474, %v1284
        %1478 = vst.msk [vmem:[%s287 + $0x18] sm:$0xff] %vm1474, %v1287
        %1479 = vst.msk [vmem:[%s287 + $0x20] sm:$0xff] %vm1474, %v1292
        %1480 = vst.msk [vmem:[%s287 + $0x28] sm:$0xff] %vm1474, %v1295
        %1481 = vst.msk [vmem:[%s287 + $0x30] sm:$0xff] %vm1474, %v1300
        %1482 = vst.msk [vmem:[%s287 + $0x38] sm:$0xff] %vm1474, %v1303
        %1483 = vst.msk [vmem:[%s287 + $0x40] sm:$0xff] %vm1474, %v1308
        %1484 = vst.msk [vmem:[%s287 + $0x48] sm:$0xff] %vm1474, %v1311
        %1485 = vst.msk [vmem:[%s287 + $0x50] sm:$0xff] %vm1474, %v1316
        %1486 = vst.msk [vmem:[%s287 + $0x58] sm:$0xff] %vm1474, %v1319
        %1487 = vst.msk [vmem:[%s287 + $0x60] sm:$0xff] %vm1474, %v1324
        %1488 = vst.msk [vmem:[%s287 + $0x68] sm:$0xff] %vm1474, %v1327
        %1489 = vst.msk [vmem:[%s287 + $0x70] sm:$0xff] %vm1474, %v1332
        %1490 = vst.msk [vmem:[%s287 + $0x78] sm:$0xff] %vm1474, %v1335
        %1491 = vst.msk [vmem:[%s287 + $0x80] sm:$0xff] %vm1474, %v1340
        %1492 = vst.msk [vmem:[%s287 + $0x88] sm:$0xff] %vm1474, %v1343
        %1493 = vst.msk [vmem:[%s287 + $0x90] sm:$0xff] %vm1474, %v1348
        %1494 = vst.msk [vmem:[%s287 + $0x98] sm:$0xff] %vm1474, %v1351
        %1495 = vst.msk [vmem:[%s287 + $0xa0] sm:$0xff] %vm1474, %v1356
        %1496 = vst.msk [vmem:[%s287 + $0xa8] sm:$0xff] %vm1474, %v1359
        %1497 = vst.msk [vmem:[%s287 + $0xb0] sm:$0xff] %vm1474, %v1364
        %1498 = vst.msk [vmem:[%s287 + $0xb8] sm:$0xff] %vm1474, %v1367
        %1499 = vst.msk [vmem:[%s287 + $0xc0] sm:$0xff] %vm1474, %v1372
        %1500 = vst.msk [vmem:[%s287 + $0xc8] sm:$0xff] %vm1474, %v1375
        %1501 = vst.msk [vmem:[%s287 + $0xd0] sm:$0xff] %vm1474, %v1380
        %1502 = vst.msk [vmem:[%s287 + $0xd8] sm:$0xff] %vm1474, %v1383
        %1503 = vst.msk [vmem:[%s287 + $0xe0] sm:$0xff] %vm1474, %v1388
        %1504 = vst.msk [vmem:[%s287 + $0xe8] sm:$0xff] %vm1474, %v1391
        %1505 = vst.msk [vmem:[%s287 + $0xf0] sm:$0xff] %vm1474, %v1396
        %1506 = vst.msk [vmem:[%s287 + $0xf8] sm:$0xff] %vm1474, %v1399
        %1507 = vst.msk [vmem:[%s287 + $0x100] sm:$0xff] %vm1474, %v1404
        %1508 = vst.msk [vmem:[%s287 + $0x108] sm:$0xff] %vm1474, %v1407
        %1509 = vst.msk [vmem:[%s287 + $0x110] sm:$0xff] %vm1474, %v1412
        %1510 = vst.msk [vmem:[%s287 + $0x118] sm:$0xff] %vm1474, %v1415
        %1511 = vst.msk [vmem:[%s287 + $0x120] sm:$0xff] %vm1474, %v1420
        %1512 = vst.msk [vmem:[%s287 + $0x128] sm:$0xff] %vm1474, %v1423
        %1513 = vst.msk [vmem:[%s287 + $0x130] sm:$0xff] %vm1474, %v1428
        %1514 = vst.msk [vmem:[%s287 + $0x138] sm:$0xff] %vm1474, %v1431
        %1515 = vst.msk [vmem:[%s287 + $0x140] sm:$0xff] %vm1474, %v1436
        %1516 = vst.msk [vmem:[%s287 + $0x148] sm:$0xff] %vm1474, %v1439
        %1517 = vst.msk [vmem:[%s287 + $0x150] sm:$0xff] %vm1474, %v1444
        %1518 = vst.msk [vmem:[%s287 + $0x158] sm:$0xff] %vm1474, %v1447
        %1519 = vst.msk [vmem:[%s287 + $0x160] sm:$0xff] %vm1474, %v1452
        %1520 = vst.msk [vmem:[%s287 + $0x168] sm:$0xff] %vm1474, %v1455
        %1521 = vst.msk [vmem:[%s287 + $0x170] sm:$0xff] %vm1474, %v1460
        %1522 = vst.msk [vmem:[%s287 + $0x178] sm:$0xff] %vm1474, %v1463
        %1523 = vst.msk [vmem:[%s287 + $0x180] sm:$0xff] %vm1474, %v1468
        %1524 = vst.msk [vmem:[%s287 + $0x188] sm:$0xff] %vm1474, %v1471
      $region52: #{tpu_custom_call.1} parent=35 // pred_fallthru
        _
      %s1525 = smul.u32 %s19, %s20
      %s1526 = smul.u32 50, %s1525
      %p1527 = scmp.lt.s32.totalorder %s1526, 49
      %s1528 = scalar_select %p1527, %s1526, 49
      %s1529 = smul.addr %s1528, 8
      %s1530 = scalar_lea.vmem %s4, %s1529
      // Predicated region
      $region53: #{tpu_custom_call.1} parent=35 // pred_check
        %p1531 = pneg %p154
      $region54: #{tpu_custom_call.1} parent=35 // pred_check_branch
        %1533 = sbr.rel (%p1531) target = $region56
      $region55: #{tpu_custom_call.1} parent=35 // pred_region
        %s1534 = smul.u32 %s19, %s20
        %s1535 = smul.u32 50, %s1534
      $region56: #{tpu_custom_call.1} parent=35 // pred_fallthru
        _
    $region36: #{tpu_custom_call.1} parent=5 // pred_fallthru
      _
    %p1536 = scmp.le.s32.totalorder 2, %s10
    // Predicated region
    $region57: #{tpu_custom_call.1} parent=5 // pred_check
      %p1537 = pneg %p1536
    $region58: #{tpu_custom_call.1} parent=5 // pred_check_branch
      %1539 = sbr.rel (%p1537) target = $region60
    $region59: #{tpu_custom_call.1} parent=5 // pred_region
      %s1540 = ssub.s32 %s10, 2
      // Predicated region
      $region61: #{tpu_custom_call.1} parent=59 // pred_check
        %p1541 = pneg %p160
      $region62: #{tpu_custom_call.1} parent=59 // pred_check_branch
        %1543 = sbr.rel (%p1541) target = $region64
      $region63: #{tpu_custom_call.1} parent=59 // pred_region
        %s1544 = smul.u32 %s21, %s22
        %s1545 = smul.u32 50, %s1544
        %p1546 = scmp.lt.s32.totalorder %s1545, 49
        %s1547 = scalar_select %p1546, %s1545, 49
        %s1548 = smul.addr %s1547, 8
        %s1549 = scalar_lea.vmem %s4, %s1548
      $region64: #{tpu_custom_call.1} parent=59 // pred_fallthru
        _
    $region60: #{tpu_custom_call.1} parent=5 // pred_fallthru
      _
  $region6: #{tpu_custom_call.1} parent=0 // loop_footer
    %s14 = sadd.s32 1, %s10
  $region7: #{tpu_custom_call.1} parent=0 // loop_footer_branch
    %9 = sbr.rel target = $region3
  $region8: #{tpu_custom_call.1} parent=0 // loop_exit
    _

</llo_original>
